<compile_context>
chip_gen: v7x
topology: tpu7x:2x2x1
jax: 0.10.0
libtpu: 0.0.40
codegen_flags: <defaults>
</compile_context>

<pallas_src>
import jax
import jax.numpy as jnp
from jax import lax
from jax.experimental import pallas as pl
from jax.experimental.pallas import tpu as pltpu

FILTERING_SIZE = 32
ENVELOPE_SIZE = 16
BN_EPS = 1e-5


def _round_up(x, m):
    return ((x + m - 1) // m) * m


def _make_kernel(n, cb, jb, la, l2p, l1_valid, denom):
    """Kernel for one block of `cb` input channels and `jb` filter sets."""
    inv_denom = float(1.0 / denom)
    env_scale = float(1.0 / FILTERING_SIZE)
    n_parts = 2 if jb == 1 else 1          # extra ILP when there is a single FIR chain

    def kernel(x_ref, w_ref, b_ref, o_ref):
        # x_ref : (n, cb, lx)       raw input channels, zero padded in time
        # w_ref : (jb, cb, 32)      filtering taps (filter-set major)
        # b_ref : (jb, cb, 1)       envelope bias (filter-set major)
        # o_ref : (jb, n, cb, l2p)  output block (filter-set major, lane dense)
        w = w_ref[...]
        b = b_ref[...]

        # validity mask over the filtered-time axis for the BatchNorm statistics
        t_idx = lax.broadcasted_iota(jnp.int32, (1, 1, la), 2)
        valid = t_idx < l1_valid

        # ---- grouped 32-tap FIR, k-outer: each lane-shifted window of x is loaded
        #      once per tap and reused by all jb filter sets of this invocation.
        parts = [[jnp.zeros((n, cb, la), jnp.float32) for _ in range(n_parts)]
                 for _ in range(jb)]
        for k in range(FILTERING_SIZE):
            xk = x_ref[:, :, k:k + la]                      # (n, cb, la), la % 128 == 0
            for jj in range(jb):
                tap = w[jj:jj + 1, :, k:k + 1]              # (1, cb, 1)
                parts[jj][k % n_parts] = parts[jj][k % n_parts] + tap * xk

        for jj in range(jb):
            acc = parts[jj][0] if n_parts == 1 else parts[jj][0] + parts[jj][1]

            # ---- BatchNorm1d (training-mode batch stats, affine=False), two passes
            #      (mean, then centered variance) for numerical robustness; the padded
            #      tail (t >= l1) is masked out of the statistics.
            am = jnp.where(valid, acc, 0.0)
            mean = jnp.sum(am, axis=(0, 2), keepdims=True) * jnp.float32(inv_denom)
            cen = acc - mean
            cm = jnp.where(valid, cen, 0.0)
            var = jnp.sum(cm * cm, axis=(0, 2), keepdims=True) * jnp.float32(inv_denom)
            # fold the constant 1/32 envelope weight into the per-channel scale
            scale = lax.rsqrt(var + jnp.float32(BN_EPS)) * jnp.float32(env_scale)

            # ---- abs of the normalized signal (already carries the 1/32 factor)
            z = jnp.abs(cen) * scale                        # (n, cb, la)

            # ---- 16-tap moving sum; every slice is l2p long (lane dense, in bounds
            #      since la = l2p + 128 >= l2p + 15).
            env = z[:, :, 0:l2p]
            for d in range(1, ENVELOPE_SIZE):
                env = env + z[:, :, d:d + l2p]

            # positions >= l2 are pad-contaminated; the wrapper slices them off.
            o_ref[jj] = (env + b[jj:jj + 1]).astype(o_ref.dtype)

    return kernel


def _pick_blocks(c_in, cpc, n, lx, la, l2p, budget_bytes=8 << 20):
    """Choose (cb, jb): input-channel block size and filter-set block size.

    Priorities: (1) grid has >= 2 parallel steps (v7x megacore + DMA double
    buffering), (2) many filter sets share each shifted x window (jb large),
    (3) larger channel blocks -- subject to a conservative per-step VMEM footprint
    and to cb being a multiple of 8 (full sublanes) or the whole channel dim.
    """
    def footprint(cb, jb):
        # double-buffered x / out blocks + jb accumulators + ~5 temporaries, all f32
        return 4 * n * cb * (2 * lx + 2 * jb * l2p + (jb + 5) * la)

    cb_cands = [d for d in range(1, c_in + 1)
                if c_in % d == 0 and (d % 8 == 0 or d == c_in)]
    jb_cands = [d for d in range(1, cpc + 1) if cpc % d == 0]

    best = None
    for cb in cb_cands:
        for jb in jb_cands:
            if footprint(cb, jb) > budget_bytes:
                continue
            grid_len = (c_in // cb) * (cpc // jb)
            score = (grid_len >= 2, jb, cb)
            if best is None or score > best[0]:
                best = (score, cb, jb)
    if best is None:                      # nothing fits the budget: smallest legal block
        return min(cb_cands), 1
    return best[1], best[2]


def envelope_detector_forward(x, w_filt, b_env, channels_per_channel):
    """x: (N, C_in, L) NCL; w_filt: (C_in*cpc, 1, 32); b_env: (C_in*cpc,)."""
    n, c_in, length = x.shape
    cpc = int(channels_per_channel)
    out_ch = c_in * cpc
    l1 = length - FILTERING_SIZE + 1
    l2 = l1 - ENVELOPE_SIZE + 1
    assert l2 >= 1, "sequence too short for the two VALID convolutions"

    # lane-dense working lengths: everything the kernel touches is a multiple of 128
    l2p = _round_up(l2, 128)              # stored output length
    la = l2p + 128                        # FIR / BN working length (>= l1, >= l2p + 15)
    lx = la + 128                         # padded input length (>= la + 31, >= L)

    x_p = jnp.pad(x.astype(jnp.float32), ((0, 0), (0, 0), (0, lx - length)))

    # tiny parameter tensors reordered filter-set major: out channel = c*cpc + j
    w_r = (w_filt.astype(jnp.float32)
           .reshape(c_in, cpc, FILTERING_SIZE).transpose(1, 0, 2))       # (cpc, C_in, 32)
    b_r = (b_env.astype(jnp.float32)
           .reshape(c_in, cpc).transpose(1, 0).reshape(cpc, c_in, 1))    # (cpc, C_in, 1)

    cb, jb = _pick_blocks(c_in, cpc, n, lx, la, l2p)
    c_blocks, j_blocks = c_in // cb, cpc // jb

    # Put the longer parallel axis first so megacore sharding always sees it.
    if j_blocks > c_blocks:
        grid = (j_blocks, c_blocks)
        x_map = lambda jg, i: (0, i, 0)
        w_map = lambda jg, i: (jg, i, 0)
        o_map = lambda jg, i: (jg, 0, i, 0)
    else:
        grid = (c_blocks, j_blocks)
        x_map = lambda i, jg: (0, i, 0)
        w_map = lambda i, jg: (jg, i, 0)
        o_map = lambda i, jg: (jg, 0, i, 0)

    kernel = _make_kernel(n, cb, jb, la, l2p, l1, float(n * l1))

    cost = pl.CostEstimate(
        flops=int(n * out_ch * la * (2 * FILTERING_SIZE + ENVELOPE_SIZE + 12)),
        transcendentals=int(out_ch),
        bytes_accessed=int(4 * (n * c_in * lx + n * out_ch * l2p
                                + out_ch * (FILTERING_SIZE + 1))),
    )

    out4 = pl.pallas_call(
        kernel,
        out_shape=jax.ShapeDtypeStruct((cpc, n, c_in, l2p), jnp.float32),
        grid=grid,
        in_specs=[
            pl.BlockSpec((n, cb, lx), x_map),
            pl.BlockSpec((jb, cb, FILTERING_SIZE), w_map),
            pl.BlockSpec((jb, cb, 1), w_map),
        ],
        out_specs=pl.BlockSpec((jb, n, cb, l2p), o_map),
        compiler_params=pltpu.CompilerParams(
            dimension_semantics=("parallel", "parallel"),
            vmem_limit_bytes=32 * 1024 * 1024,
        ),
        cost_estimate=cost,
    )(x_p, w_r, b_r)

    # (cpc, N, C_in, l2p) -> PyTorch order (N, C_in*cpc, l2); out channel = c*cpc + j.
    # One fused XLA transpose+slice, kept in the wrapper so that every in-kernel store
    # stays a dense, aligned full-tile store (see header comment).
    out = out4.transpose(1, 2, 0, 3).reshape(n, out_ch, l2p)[:, :, :l2]
    return out


def reference_forward(x, w_filt, b_env, channels_per_channel):
    """Pure-JAX reference using lax.conv (for correctness checking only)."""
    c_in = x.shape[1]
    out_ch = c_in * channels_per_channel
    dn1 = jax.lax.conv_dimension_numbers(x.shape, w_filt.shape, ("NCH", "OIH", "NCH"))
    y = jax.lax.conv_general_dilated(
        x.astype(jnp.float32), w_filt.astype(jnp.float32), (1,), "VALID",
        dimension_numbers=dn1, feature_group_count=c_in)
    mean = jnp.mean(y, axis=(0, 2), keepdims=True)
    var = jnp.mean((y - mean) ** 2, axis=(0, 2), keepdims=True)
    z = jnp.abs((y - mean) / jnp.sqrt(var + BN_EPS))
    w_env = jnp.full((out_ch, 1, ENVELOPE_SIZE), 1.0 / FILTERING_SIZE, jnp.float32)
    dn2 = jax.lax.conv_dimension_numbers(z.shape, w_env.shape, ("NCH", "OIH", "NCH"))
    e = jax.lax.conv_general_dilated(
        z, w_env, (1,), "VALID", dimension_numbers=dn2, feature_group_count=out_ch)
    return e + b_env.reshape(1, out_ch, 1)


if __name__ == "__main__":
    # TODO(synk): BatchNorm running-stat updates are training-time side effects that do
    # not affect the forward output; they are not materialized here.
    # TODO(synk): for cpc >= 8 the 32-tap MAC could be moved to the MXU (im2col +
    # (time x 32) @ (32 x cpc)); the VPU path is kept for the small-cpc regime.
    in_channels = 4
    channels_per_channel = 2
    out_channels = in_channels * channels_per_channel
    N, L = 2, 64  # L must be >= 32 + 16 - 1 = 47

    key = jax.random.PRNGKey(0)
    kx, kw, kb = jax.random.split(key, 3)
    x = jax.random.normal(kx, (N, in_channels, L), jnp.float32)

    # Deterministic parameter init (matching PyTorch init bounds):
    bound_w = 1.0 / (FILTERING_SIZE ** 0.5)
    w_filt = jax.random.uniform(kw, (out_channels, 1, FILTERING_SIZE),
                                jnp.float32, -bound_w, bound_w)
    bound_b = 1.0 / (ENVELOPE_SIZE ** 0.5)
    b_env = jax.random.uniform(kb, (out_channels,), jnp.float32, -bound_b, bound_b)

    out = envelope_detector_forward(x, w_filt, b_env, channels_per_channel)
    out = jax.block_until_ready(out)

    ref = reference_forward(x, w_filt, b_env, channels_per_channel)
    expected_len = L - FILTERING_SIZE - ENVELOPE_SIZE + 2
    assert out.shape == (N, out_channels, expected_len), out.shape
    assert jnp.allclose(out, ref, atol=2e-4, rtol=2e-4), \
        float(jnp.max(jnp.abs(out - ref)))

    print("KERNEL_OK")
</pallas_src>

<mosaic_0001>
module attributes {stable_mosaic.version = 11 : i64} {
  func.func @kernel(%arg0: i32, %arg1: i32, %arg2: memref<2x4x384xf32, #tpu.memory_space<vmem>>, %arg3: memref<1x4x32xf32, #tpu.memory_space<vmem>>, %arg4: memref<1x4x1xf32, #tpu.memory_space<vmem>>, %arg5: memref<1x2x4x128xf32, #tpu.memory_space<vmem>>) attributes {dimension_semantics = [#tpu.dimension_semantics<parallel>, #tpu.dimension_semantics<parallel>], iteration_bounds = array<i64: 2, 1>, scalar_prefetch = 0 : i64, scratch_operands = 0 : i64, tpu.core_type = #tpu.core_type<tc>, window_params = [{transform_indices = @transform_0, window_bounds = array<i64: 2, 4, 384>}, {transform_indices = @transform_1, window_bounds = array<i64: 1, 4, 32>}, {transform_indices = @transform_2, window_bounds = array<i64: 1, 4, 1>}, {transform_indices = @transform_3, window_bounds = array<i64: 1, 2, 4, 128>}]} {
    %c0 = arith.constant 0 : index
    %c0_0 = arith.constant 0 : index
    %c0_1 = arith.constant 0 : index
    %0 = vector.load %arg3[%c0, %c0_0, %c0_1] : memref<1x4x32xf32, #tpu.memory_space<vmem>>, vector<1x4x32xf32>
    %c0_2 = arith.constant 0 : index
    %c0_3 = arith.constant 0 : index
    %c0_4 = arith.constant 0 : index
    %1 = vector.load %arg4[%c0_2, %c0_3, %c0_4] : memref<1x4x1xf32, #tpu.memory_space<vmem>>, vector<1x4x1xf32>
    %2 = tpu.iota {dimensions = array<i32: 2>} : vector<1x1x256xi32>
    %c33_i32 = arith.constant 33 : i32
    %3 = vector.broadcast %c33_i32 : i32 to vector<1x1x256xi32>
    %4 = arith.cmpi slt, %2, %3 : vector<1x1x256xi32>
    %cst = arith.constant 0.000000e+00 : f32
    %5 = vector.broadcast %cst : f32 to vector<2x4x256xf32>
    %cst_5 = arith.constant 0.000000e+00 : f32
    %6 = vector.broadcast %cst_5 : f32 to vector<2x4x256xf32>
    %c0_6 = arith.constant 0 : index
    %c0_7 = arith.constant 0 : index
    %c0_8 = arith.constant 0 : index
    %7 = vector.load %arg2[%c0_6, %c0_7, %c0_8] : memref<2x4x384xf32, #tpu.memory_space<vmem>>, vector<2x4x256xf32>
    %8 = vector.extract_strided_slice %0 {offsets = [0, 0, 0], sizes = [1, 4, 1], strides = [1, 1, 1]} : vector<1x4x32xf32> to vector<1x4x1xf32>
    %9 = vector.broadcast %8 : vector<1x4x1xf32> to vector<2x4x256xf32>
    %10 = arith.mulf %9, %7 : vector<2x4x256xf32>
    %11 = arith.addf %5, %10 : vector<2x4x256xf32>
    %c0_9 = arith.constant 0 : index
    %c0_10 = arith.constant 0 : index
    %c1 = arith.constant 1 : index
    %12 = vector.load %arg2[%c0_9, %c0_10, %c1] : memref<2x4x384xf32, #tpu.memory_space<vmem>>, vector<2x4x256xf32>
    %13 = vector.extract_strided_slice %0 {offsets = [0, 0, 1], sizes = [1, 4, 1], strides = [1, 1, 1]} : vector<1x4x32xf32> to vector<1x4x1xf32>
    %14 = vector.broadcast %13 : vector<1x4x1xf32> to vector<2x4x256xf32>
    %15 = arith.mulf %14, %12 : vector<2x4x256xf32>
    %16 = arith.addf %6, %15 : vector<2x4x256xf32>
    %c0_11 = arith.constant 0 : index
    %c0_12 = arith.constant 0 : index
    %c2 = arith.constant 2 : index
    %17 = vector.load %arg2[%c0_11, %c0_12, %c2] : memref<2x4x384xf32, #tpu.memory_space<vmem>>, vector<2x4x256xf32>
    %18 = vector.extract_strided_slice %0 {offsets = [0, 0, 2], sizes = [1, 4, 1], strides = [1, 1, 1]} : vector<1x4x32xf32> to vector<1x4x1xf32>
    %19 = vector.broadcast %18 : vector<1x4x1xf32> to vector<2x4x256xf32>
    %20 = arith.mulf %19, %17 : vector<2x4x256xf32>
    %21 = arith.addf %11, %20 : vector<2x4x256xf32>
    %c0_13 = arith.constant 0 : index
    %c0_14 = arith.constant 0 : index
    %c3 = arith.constant 3 : index
    %22 = vector.load %arg2[%c0_13, %c0_14, %c3] : memref<2x4x384xf32, #tpu.memory_space<vmem>>, vector<2x4x256xf32>
    %23 = vector.extract_strided_slice %0 {offsets = [0, 0, 3], sizes = [1, 4, 1], strides = [1, 1, 1]} : vector<1x4x32xf32> to vector<1x4x1xf32>
    %24 = vector.broadcast %23 : vector<1x4x1xf32> to vector<2x4x256xf32>
    %25 = arith.mulf %24, %22 : vector<2x4x256xf32>
    %26 = arith.addf %16, %25 : vector<2x4x256xf32>
    %c0_15 = arith.constant 0 : index
    %c0_16 = arith.constant 0 : index
    %c4 = arith.constant 4 : index
    %27 = vector.load %arg2[%c0_15, %c0_16, %c4] : memref<2x4x384xf32, #tpu.memory_space<vmem>>, vector<2x4x256xf32>
    %28 = vector.extract_strided_slice %0 {offsets = [0, 0, 4], sizes = [1, 4, 1], strides = [1, 1, 1]} : vector<1x4x32xf32> to vector<1x4x1xf32>
    %29 = vector.broadcast %28 : vector<1x4x1xf32> to vector<2x4x256xf32>
    %30 = arith.mulf %29, %27 : vector<2x4x256xf32>
    %31 = arith.addf %21, %30 : vector<2x4x256xf32>
    %c0_17 = arith.constant 0 : index
    %c0_18 = arith.constant 0 : index
    %c5 = arith.constant 5 : index
    %32 = vector.load %arg2[%c0_17, %c0_18, %c5] : memref<2x4x384xf32, #tpu.memory_space<vmem>>, vector<2x4x256xf32>
    %33 = vector.extract_strided_slice %0 {offsets = [0, 0, 5], sizes = [1, 4, 1], strides = [1, 1, 1]} : vector<1x4x32xf32> to vector<1x4x1xf32>
    %34 = vector.broadcast %33 : vector<1x4x1xf32> to vector<2x4x256xf32>
    %35 = arith.mulf %34, %32 : vector<2x4x256xf32>
    %36 = arith.addf %26, %35 : vector<2x4x256xf32>
    %c0_19 = arith.constant 0 : index
    %c0_20 = arith.constant 0 : index
    %c6 = arith.constant 6 : index
    %37 = vector.load %arg2[%c0_19, %c0_20, %c6] : memref<2x4x384xf32, #tpu.memory_space<vmem>>, vector<2x4x256xf32>
    %38 = vector.extract_strided_slice %0 {offsets = [0, 0, 6], sizes = [1, 4, 1], strides = [1, 1, 1]} : vector<1x4x32xf32> to vector<1x4x1xf32>
    %39 = vector.broadcast %38 : vector<1x4x1xf32> to vector<2x4x256xf32>
    %40 = arith.mulf %39, %37 : vector<2x4x256xf32>
    %41 = arith.addf %31, %40 : vector<2x4x256xf32>
    %c0_21 = arith.constant 0 : index
    %c0_22 = arith.constant 0 : index
    %c7 = arith.constant 7 : index
    %42 = vector.load %arg2[%c0_21, %c0_22, %c7] : memref<2x4x384xf32, #tpu.memory_space<vmem>>, vector<2x4x256xf32>
    %43 = vector.extract_strided_slice %0 {offsets = [0, 0, 7], sizes = [1, 4, 1], strides = [1, 1, 1]} : vector<1x4x32xf32> to vector<1x4x1xf32>
    %44 = vector.broadcast %43 : vector<1x4x1xf32> to vector<2x4x256xf32>
    %45 = arith.mulf %44, %42 : vector<2x4x256xf32>
    %46 = arith.addf %36, %45 : vector<2x4x256xf32>
    %c0_23 = arith.constant 0 : index
    %c0_24 = arith.constant 0 : index
    %c8 = arith.constant 8 : index
    %47 = vector.load %arg2[%c0_23, %c0_24, %c8] : memref<2x4x384xf32, #tpu.memory_space<vmem>>, vector<2x4x256xf32>
    %48 = vector.extract_strided_slice %0 {offsets = [0, 0, 8], sizes = [1, 4, 1], strides = [1, 1, 1]} : vector<1x4x32xf32> to vector<1x4x1xf32>
    %49 = vector.broadcast %48 : vector<1x4x1xf32> to vector<2x4x256xf32>
    %50 = arith.mulf %49, %47 : vector<2x4x256xf32>
    %51 = arith.addf %41, %50 : vector<2x4x256xf32>
    %c0_25 = arith.constant 0 : index
    %c0_26 = arith.constant 0 : index
    %c9 = arith.constant 9 : index
    %52 = vector.load %arg2[%c0_25, %c0_26, %c9] : memref<2x4x384xf32, #tpu.memory_space<vmem>>, vector<2x4x256xf32>
    %53 = vector.extract_strided_slice %0 {offsets = [0, 0, 9], sizes = [1, 4, 1], strides = [1, 1, 1]} : vector<1x4x32xf32> to vector<1x4x1xf32>
    %54 = vector.broadcast %53 : vector<1x4x1xf32> to vector<2x4x256xf32>
    %55 = arith.mulf %54, %52 : vector<2x4x256xf32>
    %56 = arith.addf %46, %55 : vector<2x4x256xf32>
    %c0_27 = arith.constant 0 : index
    %c0_28 = arith.constant 0 : index
    %c10 = arith.constant 10 : index
    %57 = vector.load %arg2[%c0_27, %c0_28, %c10] : memref<2x4x384xf32, #tpu.memory_space<vmem>>, vector<2x4x256xf32>
    %58 = vector.extract_strided_slice %0 {offsets = [0, 0, 10], sizes = [1, 4, 1], strides = [1, 1, 1]} : vector<1x4x32xf32> to vector<1x4x1xf32>
    %59 = vector.broadcast %58 : vector<1x4x1xf32> to vector<2x4x256xf32>
    %60 = arith.mulf %59, %57 : vector<2x4x256xf32>
    %61 = arith.addf %51, %60 : vector<2x4x256xf32>
    %c0_29 = arith.constant 0 : index
    %c0_30 = arith.constant 0 : index
    %c11 = arith.constant 11 : index
    %62 = vector.load %arg2[%c0_29, %c0_30, %c11] : memref<2x4x384xf32, #tpu.memory_space<vmem>>, vector<2x4x256xf32>
    %63 = vector.extract_strided_slice %0 {offsets = [0, 0, 11], sizes = [1, 4, 1], strides = [1, 1, 1]} : vector<1x4x32xf32> to vector<1x4x1xf32>
    %64 = vector.broadcast %63 : vector<1x4x1xf32> to vector<2x4x256xf32>
    %65 = arith.mulf %64, %62 : vector<2x4x256xf32>
    %66 = arith.addf %56, %65 : vector<2x4x256xf32>
    %c0_31 = arith.constant 0 : index
    %c0_32 = arith.constant 0 : index
    %c12 = arith.constant 12 : index
    %67 = vector.load %arg2[%c0_31, %c0_32, %c12] : memref<2x4x384xf32, #tpu.memory_space<vmem>>, vector<2x4x256xf32>
    %68 = vector.extract_strided_slice %0 {offsets = [0, 0, 12], sizes = [1, 4, 1], strides = [1, 1, 1]} : vector<1x4x32xf32> to vector<1x4x1xf32>
    %69 = vector.broadcast %68 : vector<1x4x1xf32> to vector<2x4x256xf32>
    %70 = arith.mulf %69, %67 : vector<2x4x256xf32>
    %71 = arith.addf %61, %70 : vector<2x4x256xf32>
    %c0_33 = arith.constant 0 : index
    %c0_34 = arith.constant 0 : index
    %c13 = arith.constant 13 : index
    %72 = vector.load %arg2[%c0_33, %c0_34, %c13] : memref<2x4x384xf32, #tpu.memory_space<vmem>>, vector<2x4x256xf32>
    %73 = vector.extract_strided_slice %0 {offsets = [0, 0, 13], sizes = [1, 4, 1], strides = [1, 1, 1]} : vector<1x4x32xf32> to vector<1x4x1xf32>
    %74 = vector.broadcast %73 : vector<1x4x1xf32> to vector<2x4x256xf32>
    %75 = arith.mulf %74, %72 : vector<2x4x256xf32>
    %76 = arith.addf %66, %75 : vector<2x4x256xf32>
    %c0_35 = arith.constant 0 : index
    %c0_36 = arith.constant 0 : index
    %c14 = arith.constant 14 : index
    %77 = vector.load %arg2[%c0_35, %c0_36, %c14] : memref<2x4x384xf32, #tpu.memory_space<vmem>>, vector<2x4x256xf32>
    %78 = vector.extract_strided_slice %0 {offsets = [0, 0, 14], sizes = [1, 4, 1], strides = [1, 1, 1]} : vector<1x4x32xf32> to vector<1x4x1xf32>
    %79 = vector.broadcast %78 : vector<1x4x1xf32> to vector<2x4x256xf32>
    %80 = arith.mulf %79, %77 : vector<2x4x256xf32>
    %81 = arith.addf %71, %80 : vector<2x4x256xf32>
    %c0_37 = arith.constant 0 : index
    %c0_38 = arith.constant 0 : index
    %c15 = arith.constant 15 : index
    %82 = vector.load %arg2[%c0_37, %c0_38, %c15] : memref<2x4x384xf32, #tpu.memory_space<vmem>>, vector<2x4x256xf32>
    %83 = vector.extract_strided_slice %0 {offsets = [0, 0, 15], sizes = [1, 4, 1], strides = [1, 1, 1]} : vector<1x4x32xf32> to vector<1x4x1xf32>
    %84 = vector.broadcast %83 : vector<1x4x1xf32> to vector<2x4x256xf32>
    %85 = arith.mulf %84, %82 : vector<2x4x256xf32>
    %86 = arith.addf %76, %85 : vector<2x4x256xf32>
    %c0_39 = arith.constant 0 : index
    %c0_40 = arith.constant 0 : index
    %c16 = arith.constant 16 : index
    %87 = vector.load %arg2[%c0_39, %c0_40, %c16] : memref<2x4x384xf32, #tpu.memory_space<vmem>>, vector<2x4x256xf32>
    %88 = vector.extract_strided_slice %0 {offsets = [0, 0, 16], sizes = [1, 4, 1], strides = [1, 1, 1]} : vector<1x4x32xf32> to vector<1x4x1xf32>
    %89 = vector.broadcast %88 : vector<1x4x1xf32> to vector<2x4x256xf32>
    %90 = arith.mulf %89, %87 : vector<2x4x256xf32>
    %91 = arith.addf %81, %90 : vector<2x4x256xf32>
    %c0_41 = arith.constant 0 : index
    %c0_42 = arith.constant 0 : index
    %c17 = arith.constant 17 : index
    %92 = vector.load %arg2[%c0_41, %c0_42, %c17] : memref<2x4x384xf32, #tpu.memory_space<vmem>>, vector<2x4x256xf32>
    %93 = vector.extract_strided_slice %0 {offsets = [0, 0, 17], sizes = [1, 4, 1], strides = [1, 1, 1]} : vector<1x4x32xf32> to vector<1x4x1xf32>
    %94 = vector.broadcast %93 : vector<1x4x1xf32> to vector<2x4x256xf32>
    %95 = arith.mulf %94, %92 : vector<2x4x256xf32>
    %96 = arith.addf %86, %95 : vector<2x4x256xf32>
    %c0_43 = arith.constant 0 : index
    %c0_44 = arith.constant 0 : index
    %c18 = arith.constant 18 : index
    %97 = vector.load %arg2[%c0_43, %c0_44, %c18] : memref<2x4x384xf32, #tpu.memory_space<vmem>>, vector<2x4x256xf32>
    %98 = vector.extract_strided_slice %0 {offsets = [0, 0, 18], sizes = [1, 4, 1], strides = [1, 1, 1]} : vector<1x4x32xf32> to vector<1x4x1xf32>
    %99 = vector.broadcast %98 : vector<1x4x1xf32> to vector<2x4x256xf32>
    %100 = arith.mulf %99, %97 : vector<2x4x256xf32>
    %101 = arith.addf %91, %100 : vector<2x4x256xf32>
    %c0_45 = arith.constant 0 : index
    %c0_46 = arith.constant 0 : index
    %c19 = arith.constant 19 : index
    %102 = vector.load %arg2[%c0_45, %c0_46, %c19] : memref<2x4x384xf32, #tpu.memory_space<vmem>>, vector<2x4x256xf32>
    %103 = vector.extract_strided_slice %0 {offsets = [0, 0, 19], sizes = [1, 4, 1], strides = [1, 1, 1]} : vector<1x4x32xf32> to vector<1x4x1xf32>
    %104 = vector.broadcast %103 : vector<1x4x1xf32> to vector<2x4x256xf32>
    %105 = arith.mulf %104, %102 : vector<2x4x256xf32>
    %106 = arith.addf %96, %105 : vector<2x4x256xf32>
    %c0_47 = arith.constant 0 : index
    %c0_48 = arith.constant 0 : index
    %c20 = arith.constant 20 : index
    %107 = vector.load %arg2[%c0_47, %c0_48, %c20] : memref<2x4x384xf32, #tpu.memory_space<vmem>>, vector<2x4x256xf32>
    %108 = vector.extract_strided_slice %0 {offsets = [0, 0, 20], sizes = [1, 4, 1], strides = [1, 1, 1]} : vector<1x4x32xf32> to vector<1x4x1xf32>
    %109 = vector.broadcast %108 : vector<1x4x1xf32> to vector<2x4x256xf32>
    %110 = arith.mulf %109, %107 : vector<2x4x256xf32>
    %111 = arith.addf %101, %110 : vector<2x4x256xf32>
    %c0_49 = arith.constant 0 : index
    %c0_50 = arith.constant 0 : index
    %c21 = arith.constant 21 : index
    %112 = vector.load %arg2[%c0_49, %c0_50, %c21] : memref<2x4x384xf32, #tpu.memory_space<vmem>>, vector<2x4x256xf32>
    %113 = vector.extract_strided_slice %0 {offsets = [0, 0, 21], sizes = [1, 4, 1], strides = [1, 1, 1]} : vector<1x4x32xf32> to vector<1x4x1xf32>
    %114 = vector.broadcast %113 : vector<1x4x1xf32> to vector<2x4x256xf32>
    %115 = arith.mulf %114, %112 : vector<2x4x256xf32>
    %116 = arith.addf %106, %115 : vector<2x4x256xf32>
    %c0_51 = arith.constant 0 : index
    %c0_52 = arith.constant 0 : index
    %c22 = arith.constant 22 : index
    %117 = vector.load %arg2[%c0_51, %c0_52, %c22] : memref<2x4x384xf32, #tpu.memory_space<vmem>>, vector<2x4x256xf32>
    %118 = vector.extract_strided_slice %0 {offsets = [0, 0, 22], sizes = [1, 4, 1], strides = [1, 1, 1]} : vector<1x4x32xf32> to vector<1x4x1xf32>
    %119 = vector.broadcast %118 : vector<1x4x1xf32> to vector<2x4x256xf32>
    %120 = arith.mulf %119, %117 : vector<2x4x256xf32>
    %121 = arith.addf %111, %120 : vector<2x4x256xf32>
    %c0_53 = arith.constant 0 : index
    %c0_54 = arith.constant 0 : index
    %c23 = arith.constant 23 : index
    %122 = vector.load %arg2[%c0_53, %c0_54, %c23] : memref<2x4x384xf32, #tpu.memory_space<vmem>>, vector<2x4x256xf32>
    %123 = vector.extract_strided_slice %0 {offsets = [0, 0, 23], sizes = [1, 4, 1], strides = [1, 1, 1]} : vector<1x4x32xf32> to vector<1x4x1xf32>
    %124 = vector.broadcast %123 : vector<1x4x1xf32> to vector<2x4x256xf32>
    %125 = arith.mulf %124, %122 : vector<2x4x256xf32>
    %126 = arith.addf %116, %125 : vector<2x4x256xf32>
    %c0_55 = arith.constant 0 : index
    %c0_56 = arith.constant 0 : index
    %c24 = arith.constant 24 : index
    %127 = vector.load %arg2[%c0_55, %c0_56, %c24] : memref<2x4x384xf32, #tpu.memory_space<vmem>>, vector<2x4x256xf32>
    %128 = vector.extract_strided_slice %0 {offsets = [0, 0, 24], sizes = [1, 4, 1], strides = [1, 1, 1]} : vector<1x4x32xf32> to vector<1x4x1xf32>
    %129 = vector.broadcast %128 : vector<1x4x1xf32> to vector<2x4x256xf32>
    %130 = arith.mulf %129, %127 : vector<2x4x256xf32>
    %131 = arith.addf %121, %130 : vector<2x4x256xf32>
    %c0_57 = arith.constant 0 : index
    %c0_58 = arith.constant 0 : index
    %c25 = arith.constant 25 : index
    %132 = vector.load %arg2[%c0_57, %c0_58, %c25] : memref<2x4x384xf32, #tpu.memory_space<vmem>>, vector<2x4x256xf32>
    %133 = vector.extract_strided_slice %0 {offsets = [0, 0, 25], sizes = [1, 4, 1], strides = [1, 1, 1]} : vector<1x4x32xf32> to vector<1x4x1xf32>
    %134 = vector.broadcast %133 : vector<1x4x1xf32> to vector<2x4x256xf32>
    %135 = arith.mulf %134, %132 : vector<2x4x256xf32>
    %136 = arith.addf %126, %135 : vector<2x4x256xf32>
    %c0_59 = arith.constant 0 : index
    %c0_60 = arith.constant 0 : index
    %c26 = arith.constant 26 : index
    %137 = vector.load %arg2[%c0_59, %c0_60, %c26] : memref<2x4x384xf32, #tpu.memory_space<vmem>>, vector<2x4x256xf32>
    %138 = vector.extract_strided_slice %0 {offsets = [0, 0, 26], sizes = [1, 4, 1], strides = [1, 1, 1]} : vector<1x4x32xf32> to vector<1x4x1xf32>
    %139 = vector.broadcast %138 : vector<1x4x1xf32> to vector<2x4x256xf32>
    %140 = arith.mulf %139, %137 : vector<2x4x256xf32>
    %141 = arith.addf %131, %140 : vector<2x4x256xf32>
    %c0_61 = arith.constant 0 : index
    %c0_62 = arith.constant 0 : index
    %c27 = arith.constant 27 : index
    %142 = vector.load %arg2[%c0_61, %c0_62, %c27] : memref<2x4x384xf32, #tpu.memory_space<vmem>>, vector<2x4x256xf32>
    %143 = vector.extract_strided_slice %0 {offsets = [0, 0, 27], sizes = [1, 4, 1], strides = [1, 1, 1]} : vector<1x4x32xf32> to vector<1x4x1xf32>
    %144 = vector.broadcast %143 : vector<1x4x1xf32> to vector<2x4x256xf32>
    %145 = arith.mulf %144, %142 : vector<2x4x256xf32>
    %146 = arith.addf %136, %145 : vector<2x4x256xf32>
    %c0_63 = arith.constant 0 : index
    %c0_64 = arith.constant 0 : index
    %c28 = arith.constant 28 : index
    %147 = vector.load %arg2[%c0_63, %c0_64, %c28] : memref<2x4x384xf32, #tpu.memory_space<vmem>>, vector<2x4x256xf32>
    %148 = vector.extract_strided_slice %0 {offsets = [0, 0, 28], sizes = [1, 4, 1], strides = [1, 1, 1]} : vector<1x4x32xf32> to vector<1x4x1xf32>
    %149 = vector.broadcast %148 : vector<1x4x1xf32> to vector<2x4x256xf32>
    %150 = arith.mulf %149, %147 : vector<2x4x256xf32>
    %151 = arith.addf %141, %150 : vector<2x4x256xf32>
    %c0_65 = arith.constant 0 : index
    %c0_66 = arith.constant 0 : index
    %c29 = arith.constant 29 : index
    %152 = vector.load %arg2[%c0_65, %c0_66, %c29] : memref<2x4x384xf32, #tpu.memory_space<vmem>>, vector<2x4x256xf32>
    %153 = vector.extract_strided_slice %0 {offsets = [0, 0, 29], sizes = [1, 4, 1], strides = [1, 1, 1]} : vector<1x4x32xf32> to vector<1x4x1xf32>
    %154 = vector.broadcast %153 : vector<1x4x1xf32> to vector<2x4x256xf32>
    %155 = arith.mulf %154, %152 : vector<2x4x256xf32>
    %156 = arith.addf %146, %155 : vector<2x4x256xf32>
    %c0_67 = arith.constant 0 : index
    %c0_68 = arith.constant 0 : index
    %c30 = arith.constant 30 : index
    %157 = vector.load %arg2[%c0_67, %c0_68, %c30] : memref<2x4x384xf32, #tpu.memory_space<vmem>>, vector<2x4x256xf32>
    %158 = vector.extract_strided_slice %0 {offsets = [0, 0, 30], sizes = [1, 4, 1], strides = [1, 1, 1]} : vector<1x4x32xf32> to vector<1x4x1xf32>
    %159 = vector.broadcast %158 : vector<1x4x1xf32> to vector<2x4x256xf32>
    %160 = arith.mulf %159, %157 : vector<2x4x256xf32>
    %161 = arith.addf %151, %160 : vector<2x4x256xf32>
    %c0_69 = arith.constant 0 : index
    %c0_70 = arith.constant 0 : index
    %c31 = arith.constant 31 : index
    %162 = vector.load %arg2[%c0_69, %c0_70, %c31] : memref<2x4x384xf32, #tpu.memory_space<vmem>>, vector<2x4x256xf32>
    %163 = vector.extract_strided_slice %0 {offsets = [0, 0, 31], sizes = [1, 4, 1], strides = [1, 1, 1]} : vector<1x4x32xf32> to vector<1x4x1xf32>
    %164 = vector.broadcast %163 : vector<1x4x1xf32> to vector<2x4x256xf32>
    %165 = arith.mulf %164, %162 : vector<2x4x256xf32>
    %166 = arith.addf %156, %165 : vector<2x4x256xf32>
    %167 = arith.addf %161, %166 : vector<2x4x256xf32>
    %cst_71 = arith.constant 0.000000e+00 : f32
    %168 = vector.shape_cast %4 : vector<1x1x256xi1> to vector<1x1x256xi1>
    %169 = vector.broadcast %168 : vector<1x1x256xi1> to vector<2x4x256xi1>
    %170 = vector.broadcast %cst_71 : f32 to vector<2x4x256xf32>
    %171 = arith.select %169, %167, %170 : vector<2x4x256xi1>, vector<2x4x256xf32>
    %cst_72 = arith.constant dense<0.000000e+00> : vector<4xf32>
    %172 = vector.multi_reduction <add>, %171, %cst_72 [0, 2] : vector<2x4x256xf32> to vector<4xf32>
    %173 = vector.shape_cast %172 : vector<4xf32> to vector<1x4x1xf32>
    %cst_73 = arith.constant 0.0151515156 : f32
    %174 = vector.broadcast %cst_73 : f32 to vector<1x4x1xf32>
    %175 = arith.mulf %173, %174 : vector<1x4x1xf32>
    %176 = vector.broadcast %175 : vector<1x4x1xf32> to vector<2x4x256xf32>
    %177 = arith.subf %167, %176 : vector<2x4x256xf32>
    %cst_74 = arith.constant 0.000000e+00 : f32
    %178 = vector.shape_cast %4 : vector<1x1x256xi1> to vector<1x1x256xi1>
    %179 = vector.broadcast %178 : vector<1x1x256xi1> to vector<2x4x256xi1>
    %180 = vector.broadcast %cst_74 : f32 to vector<2x4x256xf32>
    %181 = arith.select %179, %177, %180 : vector<2x4x256xi1>, vector<2x4x256xf32>
    %182 = arith.mulf %181, %181 : vector<2x4x256xf32>
    %cst_75 = arith.constant dense<0.000000e+00> : vector<4xf32>
    %183 = vector.multi_reduction <add>, %182, %cst_75 [0, 2] : vector<2x4x256xf32> to vector<4xf32>
    %184 = vector.shape_cast %183 : vector<4xf32> to vector<1x4x1xf32>
    %cst_76 = arith.constant 0.0151515156 : f32
    %185 = vector.broadcast %cst_76 : f32 to vector<1x4x1xf32>
    %186 = arith.mulf %184, %185 : vector<1x4x1xf32>
    %cst_77 = arith.constant 9.99999974E-6 : f32
    %187 = vector.broadcast %cst_77 : f32 to vector<1x4x1xf32>
    %188 = arith.addf %186, %187 : vector<1x4x1xf32>
    %189 = math.rsqrt %188 : vector<1x4x1xf32>
    %cst_78 = arith.constant 3.125000e-02 : f32
    %190 = vector.broadcast %cst_78 : f32 to vector<1x4x1xf32>
    %191 = arith.mulf %189, %190 : vector<1x4x1xf32>
    %192 = math.absf %177 : vector<2x4x256xf32>
    %193 = vector.broadcast %191 : vector<1x4x1xf32> to vector<2x4x256xf32>
    %194 = arith.mulf %192, %193 : vector<2x4x256xf32>
    %195 = vector.extract_strided_slice %194 {offsets = [0, 0, 0], sizes = [2, 4, 128], strides = [1, 1, 1]} : vector<2x4x256xf32> to vector<2x4x128xf32>
    %196 = vector.extract_strided_slice %194 {offsets = [0, 0, 1], sizes = [2, 4, 128], strides = [1, 1, 1]} : vector<2x4x256xf32> to vector<2x4x128xf32>
    %197 = arith.addf %195, %196 : vector<2x4x128xf32>
    %198 = vector.extract_strided_slice %194 {offsets = [0, 0, 2], sizes = [2, 4, 128], strides = [1, 1, 1]} : vector<2x4x256xf32> to vector<2x4x128xf32>
    %199 = arith.addf %197, %198 : vector<2x4x128xf32>
    %200 = vector.extract_strided_slice %194 {offsets = [0, 0, 3], sizes = [2, 4, 128], strides = [1, 1, 1]} : vector<2x4x256xf32> to vector<2x4x128xf32>
    %201 = arith.addf %199, %200 : vector<2x4x128xf32>
    %202 = vector.extract_strided_slice %194 {offsets = [0, 0, 4], sizes = [2, 4, 128], strides = [1, 1, 1]} : vector<2x4x256xf32> to vector<2x4x128xf32>
    %203 = arith.addf %201, %202 : vector<2x4x128xf32>
    %204 = vector.extract_strided_slice %194 {offsets = [0, 0, 5], sizes = [2, 4, 128], strides = [1, 1, 1]} : vector<2x4x256xf32> to vector<2x4x128xf32>
    %205 = arith.addf %203, %204 : vector<2x4x128xf32>
    %206 = vector.extract_strided_slice %194 {offsets = [0, 0, 6], sizes = [2, 4, 128], strides = [1, 1, 1]} : vector<2x4x256xf32> to vector<2x4x128xf32>
    %207 = arith.addf %205, %206 : vector<2x4x128xf32>
    %208 = vector.extract_strided_slice %194 {offsets = [0, 0, 7], sizes = [2, 4, 128], strides = [1, 1, 1]} : vector<2x4x256xf32> to vector<2x4x128xf32>
    %209 = arith.addf %207, %208 : vector<2x4x128xf32>
    %210 = vector.extract_strided_slice %194 {offsets = [0, 0, 8], sizes = [2, 4, 128], strides = [1, 1, 1]} : vector<2x4x256xf32> to vector<2x4x128xf32>
    %211 = arith.addf %209, %210 : vector<2x4x128xf32>
    %212 = vector.extract_strided_slice %194 {offsets = [0, 0, 9], sizes = [2, 4, 128], strides = [1, 1, 1]} : vector<2x4x256xf32> to vector<2x4x128xf32>
    %213 = arith.addf %211, %212 : vector<2x4x128xf32>
    %214 = vector.extract_strided_slice %194 {offsets = [0, 0, 10], sizes = [2, 4, 128], strides = [1, 1, 1]} : vector<2x4x256xf32> to vector<2x4x128xf32>
    %215 = arith.addf %213, %214 : vector<2x4x128xf32>
    %216 = vector.extract_strided_slice %194 {offsets = [0, 0, 11], sizes = [2, 4, 128], strides = [1, 1, 1]} : vector<2x4x256xf32> to vector<2x4x128xf32>
    %217 = arith.addf %215, %216 : vector<2x4x128xf32>
    %218 = vector.extract_strided_slice %194 {offsets = [0, 0, 12], sizes = [2, 4, 128], strides = [1, 1, 1]} : vector<2x4x256xf32> to vector<2x4x128xf32>
    %219 = arith.addf %217, %218 : vector<2x4x128xf32>
    %220 = vector.extract_strided_slice %194 {offsets = [0, 0, 13], sizes = [2, 4, 128], strides = [1, 1, 1]} : vector<2x4x256xf32> to vector<2x4x128xf32>
    %221 = arith.addf %219, %220 : vector<2x4x128xf32>
    %222 = vector.extract_strided_slice %194 {offsets = [0, 0, 14], sizes = [2, 4, 128], strides = [1, 1, 1]} : vector<2x4x256xf32> to vector<2x4x128xf32>
    %223 = arith.addf %221, %222 : vector<2x4x128xf32>
    %224 = vector.extract_strided_slice %194 {offsets = [0, 0, 15], sizes = [2, 4, 128], strides = [1, 1, 1]} : vector<2x4x256xf32> to vector<2x4x128xf32>
    %225 = arith.addf %223, %224 : vector<2x4x128xf32>
    %226 = vector.broadcast %1 : vector<1x4x1xf32> to vector<2x4x128xf32>
    %227 = arith.addf %225, %226 : vector<2x4x128xf32>
    %c0_79 = arith.constant 0 : index
    %c0_80 = arith.constant 0 : index
    %c0_81 = arith.constant 0 : index
    %c0_82 = arith.constant 0 : index
    %228 = vector.load %arg5[%c0_79, %c0_80, %c0_81, %c0_82] : memref<1x2x4x128xf32, #tpu.memory_space<vmem>>, vector<1x2x4x128xf32>
    %229 = vector.shape_cast %228 : vector<1x2x4x128xf32> to vector<2x4x128xf32>
    %230 = vector.shape_cast %227 : vector<2x4x128xf32> to vector<1x2x4x128xf32>
    tpu.vector_store %arg5[%c0_79, %c0_80, %c0_81, %c0_82], %230 {strides = array<i32>} : memref<1x2x4x128xf32, #tpu.memory_space<vmem>>, vector<1x2x4x128xf32>,
    return
  }
  func.func @transform_0(%arg0: i32, %arg1: i32) -> (i32, i32, i32) {
    %c0_i32 = arith.constant 0 : i32
    %c0_i32_0 = arith.constant 0 : i32
    %c0_i32_1 = arith.constant 0 : i32
    return %c0_i32, %arg1, %c0_i32_0 : i32, i32, i32
  }
  func.func @transform_1(%arg0: i32, %arg1: i32) -> (i32, i32, i32) {
    %c0_i32 = arith.constant 0 : i32
    %c0_i32_0 = arith.constant 0 : i32
    return %arg0, %arg1, %c0_i32 : i32, i32, i32
  }
  func.func @transform_2(%arg0: i32, %arg1: i32) -> (i32, i32, i32) {
    %c0_i32 = arith.constant 0 : i32
    %c0_i32_0 = arith.constant 0 : i32
    return %arg0, %arg1, %c0_i32 : i32, i32, i32
  }
  func.func @transform_3(%arg0: i32, %arg1: i32) -> (i32, i32, i32, i32) {
    %c0_i32 = arith.constant 0 : i32
    %c0_i32_0 = arith.constant 0 : i32
    %c0_i32_1 = arith.constant 0 : i32
    return %arg0, %c0_i32, %arg1, %c0_i32_0 : i32, i32, i32, i32
  }
}

</mosaic_0001>

<llo_original>
// kernel: tpu_custom_call.1
$region0: #{tpu_custom_call.1}
  #allocation0 [shape = 'u32[]', space=smem, size = 0x4, offset = 0x4, fixed_abs, tag = 'smem constant byte address 0x4 - core index']
  #allocation1 [shape = 'u32[144,128]{1,0:T(1,128)}', space=vmem, size = 0x12000, scoped, tag = 'internal scratch']
  %s0 = inlined_call_operand.hbm [shape: f32[2,4,384], index: 0, kind: input, shape index: {}]
  %s1 = inlined_call_operand.vmem [shape: f32[2,4,32], index: 1, kind: input, shape index: {}]
  %s2 = inlined_call_operand.vmem [shape: f32[2,4,1], index: 2, kind: input, shape index: {}]
  %s3 = inlined_call_operand.hbm [shape: f32[2,2,4,128], index: 3, kind: output, shape index: {}]
  %s4 = sld [smem:[#allocation0]]
  $region49: #{tpu_custom_call.1} parent=0
    _
  %s6 = ssub.s32 1, %s4
  %s7 = scalar_select 0, %s6, %s4
  $region1: #{tpu_custom_call.1} parent=0
    #allocation2 [shape = 'u8[12288]{0}', space=vmem, size = 0x3000, scoped, tag = 'input window, operand 0, single buffered']
    #allocation3 [shape = 's32[2]{0}', space=sflag, size = 0x8, scoped, tag = 'scoped memory for tpu_custom_call.1']
    #allocation4 [shape = 's32[2]{0}', space=sflag, size = 0x8, scoped, tag = 'scoped memory for tpu_custom_call.1']
    #allocation5 [shape = 'u8[8192]{0}', space=vmem, size = 0x2000, scoped, tag = 'output window, operand 0']
    %8 = vsyncpa [#allocation3], 0
    %9 = vsyncpa [#allocation4], 0
    %s10 = scalar_lea.sflag [#allocation4], 1
    %11 = vsyncpa %s10, 0
    loop: start=0, step=1, limit=4
    $region2: #{tpu_custom_call.1} parent=1 // loop_pre_header
      _
    $region3: #{tpu_custom_call.1} parent=1 // loop_header
      %s13 = sphi 0, %s17
      %p14 = scmp.ge.s32.totalorder %s13, 4
      %s20 = sphi 0, %s32
      %s21 = sphi 0, %s28
      %s22 = sphi 0, %s20
      %s23 = sphi 0, %s21
      %s24 = sphi 0, %s22
      %s25 = sphi 0, %s23
      %s35 = sphi 0, %s37
      %s38 = sphi 0, %s35
      %s39 = sphi 0, %s38
      %s55 = sphi 0, %s39
      %s63 = sphi 0, %s65
      %s66 = sphi 0, %s63
      %s67 = sphi 0, %s66
      %s83 = sphi 0, %s67
      %s91 = sphi 0, %s93
      %s94 = sphi 0, %s91
      %s95 = sphi 0, %s94
      %s111 = sphi 0, %s95
      %s119 = sphi 0, %s121
      %s122 = sphi 0, %s119
      %s123 = sphi 0, %s122
      %s139 = sphi 0, %s123
    $region4: #{tpu_custom_call.1} parent=1 // loop_header_branch
      %16 = sbr.rel (%p14) target = $region8
    $region5: #{tpu_custom_call.1} parent=1 // loop_body
      %s18 = ssub.s32 %s13, 1
      %s19 = ssub.s32 %s13, 2
      %s26 = sadd.s32 1, %s21
      %p27 = scmp.ge.s32.totalorder %s26, 1
      %s28 = scalar_select %p27, 0, %s26
      %s29 = sadd.s32 1, %s20
      %s30 = scalar_select %p27, %s29, %s20
      %p31 = scmp.ge.s32.totalorder %s30, 2
      %s32 = scalar_select %p31, 0, %s30
      %s33 = ssub.s32 %s21, %s28
      %p34 = scmp.eq.s32.totalorder %s33, 0
      %s36 = sadd.s32 %s35, 1
      %s37 = scalar_select %p34, %s35, %s36
      %p40 = pneg %p34
      %p41 = scmp.eq.s32.totalorder %s13, 1
      %p42 = por %p40, %p41
      %p43 = scmp.ne.s32.totalorder %s35, %s38
      %p44 = scmp.eq.s32.totalorder %s13, 0
      %p45 = por %p43, %p44
      %p46 = scmp.ne.s32.totalorder %s35, %s38
      %p47 = scmp.eq.s32.totalorder %s18, 1
      %p48 = por %p46, %p47
      %p49 = scmp.ne.s32.totalorder %s38, %s39
      %p50 = scmp.eq.s32.totalorder %s18, 0
      %p51 = por %p49, %p50
      %p52 = scmp.ne.s32.totalorder %s38, %s39
      %p53 = scmp.eq.s32.totalorder %s19, 1
      %p54 = por %p52, %p53
      %p56 = scmp.ne.s32.totalorder %s39, %s55
      %p57 = scmp.eq.s32.totalorder %s19, 0
      %p58 = por %p56, %p57
      %s59 = ssub.s32 %s20, %s32
      %s60 = ssub.s32 %s21, %s28
      %s61 = sor.u32 %s59, %s60
      %p62 = scmp.eq.s32.totalorder %s61, 0
      %s64 = sadd.s32 %s63, 1
      %s65 = scalar_select %p62, %s63, %s64
      %p68 = pneg %p62
      %p69 = scmp.eq.s32.totalorder %s13, 1
      %p70 = por %p68, %p69
      %p71 = scmp.ne.s32.totalorder %s63, %s66
      %p72 = scmp.eq.s32.totalorder %s13, 0
      %p73 = por %p71, %p72
      %p74 = scmp.ne.s32.totalorder %s63, %s66
      %p75 = scmp.eq.s32.totalorder %s18, 1
      %p76 = por %p74, %p75
      %p77 = scmp.ne.s32.totalorder %s66, %s67
      %p78 = scmp.eq.s32.totalorder %s18, 0
      %p79 = por %p77, %p78
      %p80 = scmp.ne.s32.totalorder %s66, %s67
      %p81 = scmp.eq.s32.totalorder %s19, 1
      %p82 = por %p80, %p81
      %p84 = scmp.ne.s32.totalorder %s67, %s83
      %p85 = scmp.eq.s32.totalorder %s19, 0
      %p86 = por %p84, %p85
      %s87 = ssub.s32 %s20, %s32
      %s88 = ssub.s32 %s21, %s28
      %s89 = sor.u32 %s87, %s88
      %p90 = scmp.eq.s32.totalorder %s89, 0
      %s92 = sadd.s32 %s91, 1
      %s93 = scalar_select %p90, %s91, %s92
      %p96 = pneg %p90
      %p97 = scmp.eq.s32.totalorder %s13, 1
      %p98 = por %p96, %p97
      %p99 = scmp.ne.s32.totalorder %s91, %s94
      %p100 = scmp.eq.s32.totalorder %s13, 0
      %p101 = por %p99, %p100
      %p102 = scmp.ne.s32.totalorder %s91, %s94
      %p103 = scmp.eq.s32.totalorder %s18, 1
      %p104 = por %p102, %p103
      %p105 = scmp.ne.s32.totalorder %s94, %s95
      %p106 = scmp.eq.s32.totalorder %s18, 0
      %p107 = por %p105, %p106
      %p108 = scmp.ne.s32.totalorder %s94, %s95
      %p109 = scmp.eq.s32.totalorder %s19, 1
      %p110 = por %p108, %p109
      %p112 = scmp.ne.s32.totalorder %s95, %s111
      %p113 = scmp.eq.s32.totalorder %s19, 0
      %p114 = por %p112, %p113
      %s115 = ssub.s32 %s20, %s32
      %s116 = ssub.s32 %s21, %s28
      %s117 = sor.u32 %s115, %s116
      %p118 = scmp.eq.s32.totalorder %s117, 0
      %s120 = sadd.s32 %s119, 1
      %s121 = scalar_select %p118, %s119, %s120
      %p124 = pneg %p118
      %p125 = scmp.eq.s32.totalorder %s13, 1
      %p126 = por %p124, %p125
      %p127 = scmp.ne.s32.totalorder %s119, %s122
      %p128 = scmp.eq.s32.totalorder %s13, 0
      %p129 = por %p127, %p128
      %p130 = scmp.ne.s32.totalorder %s119, %s122
      %p131 = scmp.eq.s32.totalorder %s18, 1
      %p132 = por %p130, %p131
      %p133 = scmp.ne.s32.totalorder %s122, %s123
      %p134 = scmp.eq.s32.totalorder %s18, 0
      %p135 = por %p133, %p134
      %p136 = scmp.ne.s32.totalorder %s122, %s123
      %p137 = scmp.eq.s32.totalorder %s19, 1
      %p138 = por %p136, %p137
      %p140 = scmp.ne.s32.totalorder %s123, %s139
      %p141 = scmp.eq.s32.totalorder %s19, 0
      %p142 = por %p140, %p141
      %p143 = scmp.le.s32.totalorder 1, %s13
      %p144 = scmp.lt.s32.totalorder %s13, 3
      %p145 = pnand %p143, %p144
      %p146 = pneg %p145
      // Predicated region
      $region9: #{tpu_custom_call.1} parent=5 // pred_check
        _
      $region10: #{tpu_custom_call.1} parent=5 // pred_check_branch
        %148 = sbr.rel (%p145) target = $region12
      $region11: #{tpu_custom_call.1} parent=5 // pred_region
        %s149 = ssub.s32 %s13, 1
        // Predicated region
        $region13: #{tpu_custom_call.1} parent=11 // pred_check
          %p150 = pneg %p51
        $region14: #{tpu_custom_call.1} parent=11 // pred_check_branch
          %152 = sbr.rel (%p150) target = $region16
        $region15: #{tpu_custom_call.1} parent=11 // pred_region
          %s154 = ssub.s32 384, 384
          %155 = vsyncadd [#allocation3], %s154
          %s156 = smul.addr %s23, 3
          %s157 = smul.addr %s156, 64
          %s158 = scalar_lea.hbm %s0, %s157
          %s159 = sshll.u32 [#allocation2], 4
          %s160 = int_to_ptr.vmem [resolvable:$true] %s159
          %165 = dma.hbm_to_vmem [thread:$0]  %s158, 384, %s160, [#allocation3], 192, 192, 12
        $region16: #{tpu_custom_call.1} parent=11 // pred_fallthru
          _
      $region12: #{tpu_custom_call.1} parent=5 // pred_fallthru
        _
      %p166 = scmp.lt.s32.totalorder %s13, 2
      // Predicated region
      $region17: #{tpu_custom_call.1} parent=5 // pred_check
        %p167 = pneg %p166
      $region18: #{tpu_custom_call.1} parent=5 // pred_check_branch
        %169 = sbr.rel (%p167) target = $region20
      $region19: #{tpu_custom_call.1} parent=5 // pred_region
        // Predicated region
        $region21: #{tpu_custom_call.1} parent=19 // pred_check
          %p170 = pneg %p73
        $region22: #{tpu_custom_call.1} parent=19 // pred_check_branch
          %172 = sbr.rel (%p170) target = $region24
        $region23: #{tpu_custom_call.1} parent=19 // pred_region
          %p173 = scmp.lt.s32.totalorder %s20, 1
          %s174 = scalar_select %p173, %s20, 1
          %p175 = scmp.lt.s32.totalorder %s21, 0
          %s176 = scalar_select %p175, %s21, 0
          %s177 = sadd.s32 %s176, %s174
          %s178 = smul.addr %s177, 4
          %s179 = scalar_lea.vmem %s1, %s178
        $region24: #{tpu_custom_call.1} parent=19 // pred_fallthru
          _
        // Predicated region
        $region25: #{tpu_custom_call.1} parent=19 // pred_check
          %p180 = pneg %p101
        $region26: #{tpu_custom_call.1} parent=19 // pred_check_branch
          %182 = sbr.rel (%p180) target = $region28
        $region27: #{tpu_custom_call.1} parent=19 // pred_region
          %p183 = scmp.lt.s32.totalorder %s20, 1
          %s184 = scalar_select %p183, %s20, 1
          %p185 = scmp.lt.s32.totalorder %s21, 0
          %s186 = scalar_select %p185, %s21, 0
          %s187 = sadd.s32 %s186, %s184
          %s188 = smul.addr %s187, 4
          %s189 = scalar_lea.vmem %s2, %s188
        $region28: #{tpu_custom_call.1} parent=19 // pred_fallthru
          _
      $region20: #{tpu_custom_call.1} parent=5 // pred_fallthru
        _
      %p190 = scmp.le.s32.totalorder 1, %s13
      %p191 = scmp.lt.s32.totalorder %s13, 3
      %p192 = pnand %p190, %p191
      %p193 = pneg %p192
      // Predicated region
      $region29: #{tpu_custom_call.1} parent=5 // pred_check
        _
      $region30: #{tpu_custom_call.1} parent=5 // pred_check_branch
        %195 = sbr.rel (%p192) target = $region32
      $region31: #{tpu_custom_call.1} parent=5 // pred_region
        %s196 = ssub.s32 %s13, 1
        // Predicated region
        $region33: #{tpu_custom_call.1} parent=31 // pred_check
          %p197 = pneg %p51
        $region34: #{tpu_custom_call.1} parent=31 // pred_check_branch
          %199 = sbr.rel (%p197) target = $region36
        $region35: #{tpu_custom_call.1} parent=31 // pred_region
          %200 = dma.done [#allocation3], 384
        $region36: #{tpu_custom_call.1} parent=31 // pred_fallthru
          _
        %p201 = pneg %p51
        %p202 = pneg %p48
        %p203 = scmp.lt.s32.totalorder %s22, 1
        %s204 = scalar_select %p203, %s22, 1
        %p205 = scmp.lt.s32.totalorder %s23, 0
        %s206 = scalar_select %p205, %s23, 0
        %s207 = sadd.s32 %s206, %s204
        %s208 = smul.addr %s207, 4
        %s209 = scalar_lea.vmem %s1, %s208
        %p210 = pneg %p79
        %p211 = pneg %p76
        %p212 = scmp.lt.s32.totalorder %s22, 1
        %s213 = scalar_select %p212, %s22, 1
        %p214 = scmp.lt.s32.totalorder %s23, 0
        %s215 = scalar_select %p214, %s23, 0
        %s216 = sadd.s32 %s215, %s213
        %s217 = smul.addr %s216, 4
        %s218 = scalar_lea.vmem %s2, %s217
        %p219 = pneg %p107
        %p220 = pneg %p104
        %p221 = pneg %p135
        %p222 = pneg %p132
        %s223 = sand.u32 %s122, 1
        %s224 = scalar_lea.sflag [#allocation4], %s223
        %s225 = sand.u32 %s122, 1
        %s226 = smul.addr %s225, 8
        %s227 = scalar_lea.vmem [#allocation5], %s226
        %p228 = scmp.lt.s32.totalorder %s22, 1
        %s229 = scalar_select %p228, %s22, 1
        %p230 = scmp.lt.s32.totalorder %s23, 0
        %s231 = scalar_select %p230, %s23, 0
        %s232 = sadd.s32 %s231, %s229
        %s233 = smul.addr %s232, 4
        %s234 = scalar_lea.vmem %s1, %s233
        %p235 = scmp.lt.s32.totalorder %s22, 1
        %s236 = scalar_select %p235, %s22, 1
        %p237 = scmp.lt.s32.totalorder %s23, 0
        %s238 = scalar_select %p237, %s23, 0
        %s239 = sadd.s32 %s238, %s236
        %s240 = smul.addr %s239, 4
        %s241 = scalar_lea.vmem %s2, %s240
        %v242 = vld [vmem:[%s234] sm:$0xf]
        %v243 = vld [vmem:[%s241] sm:$0xf]
        %v244 = vlaneseq
        %v245 = vand.u32 %v244, 127
        %v246 = vadd.s32 %v245, 128
        %vm247 = vcmp.lt.s32.totalorder %v245, 33
        %vm248 = vcmp.lt.s32.totalorder %v246, 33
        %v249 = vld [vmem:[#allocation2] sm:$0xff]
        %v250 = vld [vmem:[#allocation2 + $0xc] sm:$0xff]
        %252 = vset.pattern.permute.xlu0 0
        %253 = vperm.xlu0 %252, %v242
        %v254 = vpop.permute.xlu0 %253
        %v258 = vcombine.high %v249, %v249
        %v259 = vcombine.high %v250, %v250
        %v262 = vmul.f32 %v254, %v249
        %v263 = vmul.f32 %v254, %v258
        %v264 = vmul.f32 %v254, %v250
        %v265 = vmul.f32 %v254, %v259
        %v266 = vadd.f32 %v262, 0.0
        %v267 = vadd.f32 %v263, 0.0
        %v268 = vadd.f32 %v264, 0.0
        %v269 = vadd.f32 %v265, 0.0
        %v270 = vld [vmem:[#allocation2] sm:$0xff]
        %v271 = vld [vmem:[#allocation2 + $0x8] sm:$0xf]
        %v272 = vld [vmem:[#allocation2 + $0xc] sm:$0xff]
        %v273 = vld [vmem:[#allocation2 + $0x14] sm:$0xf]
        %274 = vset.pattern.permute.xlu0 1
        %275 = vperm.xlu0 %274, %v242
        %v276 = vpop.permute.xlu0 %275
        %v282 = vcombine.high %v270, %v270
        %v283 = vcombine.high %v272, %v272
        %284 = vrot.lane.b32.xlu0 %v270, 127
        %v285 = vpop.permute.xlu0 %284
        %286 = vrot.lane.b32.xlu0 %v282, 127
        %v287 = vpop.permute.xlu0 %286
        %288 = vrot.lane.b32.xlu0 %v271, 127
        %v289 = vpop.permute.xlu0 %288
        %290 = vrot.lane.b32.xlu0 %v272, 127
        %v291 = vpop.permute.xlu0 %290
        %292 = vrot.lane.b32.xlu0 %v283, 127
        %v293 = vpop.permute.xlu0 %292
        %294 = vrot.lane.b32.xlu0 %v273, 127
        %v295 = vpop.permute.xlu0 %294
        %vm296 = vcmask 1039360
        %v297 = vsel %vm296, %v285, %v287
        %v298 = vsel %vm296, %v287, %v289
        %v299 = vsel %vm296, %v291, %v293
        %v300 = vsel %vm296, %v293, %v295
        %v305 = vmul.f32 %v276, %v297
        %v306 = vmul.f32 %v276, %v298
        %v307 = vmul.f32 %v276, %v299
        %v308 = vmul.f32 %v276, %v300
        %v309 = vadd.f32 %v305, 0.0
        %v310 = vadd.f32 %v306, 0.0
        %v311 = vadd.f32 %v307, 0.0
        %v312 = vadd.f32 %v308, 0.0
        %v313 = vld [vmem:[#allocation2] sm:$0xff]
        %v314 = vld [vmem:[#allocation2 + $0x8] sm:$0xf]
        %v315 = vld [vmem:[#allocation2 + $0xc] sm:$0xff]
        %v316 = vld [vmem:[#allocation2 + $0x14] sm:$0xf]
        %317 = vset.pattern.permute.xlu0 2
        %318 = vperm.xlu0 %317, %v242
        %v319 = vpop.permute.xlu0 %318
        %v325 = vcombine.high %v313, %v313
        %v326 = vcombine.high %v315, %v315
        %327 = vrot.lane.b32.xlu0 %v313, 126
        %v328 = vpop.permute.xlu0 %327
        %329 = vrot.lane.b32.xlu0 %v325, 126
        %v330 = vpop.permute.xlu0 %329
        %331 = vrot.lane.b32.xlu0 %v314, 126
        %v332 = vpop.permute.xlu0 %331
        %333 = vrot.lane.b32.xlu0 %v315, 126
        %v334 = vpop.permute.xlu0 %333
        %335 = vrot.lane.b32.xlu0 %v326, 126
        %v336 = vpop.permute.xlu0 %335
        %337 = vrot.lane.b32.xlu0 %v316, 126
        %v338 = vpop.permute.xlu0 %337
        %vm339 = vcmask 1031168
        %v340 = vsel %vm339, %v328, %v330
        %v341 = vsel %vm339, %v330, %v332
        %v342 = vsel %vm339, %v334, %v336
        %v343 = vsel %vm339, %v336, %v338
        %v348 = vmul.f32 %v319, %v340
        %v349 = vmul.f32 %v319, %v341
        %v350 = vmul.f32 %v319, %v342
        %v351 = vmul.f32 %v319, %v343
        %v352 = vadd.f32 %v266, %v348
        %v353 = vadd.f32 %v267, %v349
        %v354 = vadd.f32 %v268, %v350
        %v355 = vadd.f32 %v269, %v351
        %v356 = vld [vmem:[#allocation2] sm:$0xff]
        %v357 = vld [vmem:[#allocation2 + $0x8] sm:$0xf]
        %v358 = vld [vmem:[#allocation2 + $0xc] sm:$0xff]
        %v359 = vld [vmem:[#allocation2 + $0x14] sm:$0xf]
        %360 = vset.pattern.permute.xlu0 3
        %361 = vperm.xlu0 %360, %v242
        %v362 = vpop.permute.xlu0 %361
        %v368 = vcombine.high %v356, %v356
        %v369 = vcombine.high %v358, %v358
        %370 = vrot.lane.b32.xlu0 %v356, 125
        %v371 = vpop.permute.xlu0 %370
        %372 = vrot.lane.b32.xlu0 %v368, 125
        %v373 = vpop.permute.xlu0 %372
        %374 = vrot.lane.b32.xlu0 %v357, 125
        %v375 = vpop.permute.xlu0 %374
        %376 = vrot.lane.b32.xlu0 %v358, 125
        %v377 = vpop.permute.xlu0 %376
        %378 = vrot.lane.b32.xlu0 %v369, 125
        %v379 = vpop.permute.xlu0 %378
        %380 = vrot.lane.b32.xlu0 %v359, 125
        %v381 = vpop.permute.xlu0 %380
        %vm382 = vcmask 1022976
        %v383 = vsel %vm382, %v371, %v373
        %v384 = vsel %vm382, %v373, %v375
        %v385 = vsel %vm382, %v377, %v379
        %v386 = vsel %vm382, %v379, %v381
        %v391 = vmul.f32 %v362, %v383
        %v392 = vmul.f32 %v362, %v384
        %v393 = vmul.f32 %v362, %v385
        %v394 = vmul.f32 %v362, %v386
        %v395 = vadd.f32 %v309, %v391
        %v396 = vadd.f32 %v310, %v392
        %v397 = vadd.f32 %v311, %v393
        %v398 = vadd.f32 %v312, %v394
        %v399 = vld [vmem:[#allocation2] sm:$0xff]
        %v400 = vld [vmem:[#allocation2 + $0x8] sm:$0xf]
        %v401 = vld [vmem:[#allocation2 + $0xc] sm:$0xff]
        %v402 = vld [vmem:[#allocation2 + $0x14] sm:$0xf]
        %403 = vset.pattern.permute.xlu0 4
        %404 = vperm.xlu0 %403, %v242
        %v405 = vpop.permute.xlu0 %404
        %v411 = vcombine.high %v399, %v399
        %v412 = vcombine.high %v401, %v401
        %413 = vrot.lane.b32.xlu0 %v399, 124
        %v414 = vpop.permute.xlu0 %413
        %415 = vrot.lane.b32.xlu0 %v411, 124
        %v416 = vpop.permute.xlu0 %415
        %417 = vrot.lane.b32.xlu0 %v400, 124
        %v418 = vpop.permute.xlu0 %417
        %419 = vrot.lane.b32.xlu0 %v401, 124
        %v420 = vpop.permute.xlu0 %419
        %421 = vrot.lane.b32.xlu0 %v412, 124
        %v422 = vpop.permute.xlu0 %421
        %423 = vrot.lane.b32.xlu0 %v402, 124
        %v424 = vpop.permute.xlu0 %423
        %vm425 = vcmask 1014784
        %v426 = vsel %vm425, %v414, %v416
        %v427 = vsel %vm425, %v416, %v418
        %v428 = vsel %vm425, %v420, %v422
        %v429 = vsel %vm425, %v422, %v424
        %v434 = vmul.f32 %v405, %v426
        %v435 = vmul.f32 %v405, %v427
        %v436 = vmul.f32 %v405, %v428
        %v437 = vmul.f32 %v405, %v429
        %v438 = vadd.f32 %v352, %v434
        %v439 = vadd.f32 %v353, %v435
        %v440 = vadd.f32 %v354, %v436
        %v441 = vadd.f32 %v355, %v437
        %v442 = vld [vmem:[#allocation2] sm:$0xff]
        %v443 = vld [vmem:[#allocation2 + $0x8] sm:$0xf]
        %v444 = vld [vmem:[#allocation2 + $0xc] sm:$0xff]
        %v445 = vld [vmem:[#allocation2 + $0x14] sm:$0xf]
        %446 = vset.pattern.permute.xlu0 5
        %447 = vperm.xlu0 %446, %v242
        %v448 = vpop.permute.xlu0 %447
        %v454 = vcombine.high %v442, %v442
        %v455 = vcombine.high %v444, %v444
        %456 = vrot.lane.b32.xlu0 %v442, 123
        %v457 = vpop.permute.xlu0 %456
        %458 = vrot.lane.b32.xlu0 %v454, 123
        %v459 = vpop.permute.xlu0 %458
        %460 = vrot.lane.b32.xlu0 %v443, 123
        %v461 = vpop.permute.xlu0 %460
        %462 = vrot.lane.b32.xlu0 %v444, 123
        %v463 = vpop.permute.xlu0 %462
        %464 = vrot.lane.b32.xlu0 %v455, 123
        %v465 = vpop.permute.xlu0 %464
        %466 = vrot.lane.b32.xlu0 %v445, 123
        %v467 = vpop.permute.xlu0 %466
        %vm468 = vcmask 1006592
        %v469 = vsel %vm468, %v457, %v459
        %v470 = vsel %vm468, %v459, %v461
        %v471 = vsel %vm468, %v463, %v465
        %v472 = vsel %vm468, %v465, %v467
        %v477 = vmul.f32 %v448, %v469
        %v478 = vmul.f32 %v448, %v470
        %v479 = vmul.f32 %v448, %v471
        %v480 = vmul.f32 %v448, %v472
        %v481 = vadd.f32 %v395, %v477
        %v482 = vadd.f32 %v396, %v478
        %v483 = vadd.f32 %v397, %v479
        %v484 = vadd.f32 %v398, %v480
        %v485 = vld [vmem:[#allocation2] sm:$0xff]
        %v486 = vld [vmem:[#allocation2 + $0x8] sm:$0xf]
        %v487 = vld [vmem:[#allocation2 + $0xc] sm:$0xff]
        %v488 = vld [vmem:[#allocation2 + $0x14] sm:$0xf]
        %489 = vset.pattern.permute.xlu0 6
        %490 = vperm.xlu0 %489, %v242
        %v491 = vpop.permute.xlu0 %490
        %v497 = vcombine.high %v485, %v485
        %v498 = vcombine.high %v487, %v487
        %499 = vrot.lane.b32.xlu0 %v485, 122
        %v500 = vpop.permute.xlu0 %499
        %501 = vrot.lane.b32.xlu0 %v497, 122
        %v502 = vpop.permute.xlu0 %501
        %503 = vrot.lane.b32.xlu0 %v486, 122
        %v504 = vpop.permute.xlu0 %503
        %505 = vrot.lane.b32.xlu0 %v487, 122
        %v506 = vpop.permute.xlu0 %505
        %507 = vrot.lane.b32.xlu0 %v498, 122
        %v508 = vpop.permute.xlu0 %507
        %509 = vrot.lane.b32.xlu0 %v488, 122
        %v510 = vpop.permute.xlu0 %509
        %vm511 = vcmask 998400
        %v512 = vsel %vm511, %v500, %v502
        %v513 = vsel %vm511, %v502, %v504
        %v514 = vsel %vm511, %v506, %v508
        %v515 = vsel %vm511, %v508, %v510
        %v520 = vmul.f32 %v491, %v512
        %v521 = vmul.f32 %v491, %v513
        %v522 = vmul.f32 %v491, %v514
        %v523 = vmul.f32 %v491, %v515
        %v524 = vadd.f32 %v438, %v520
        %v525 = vadd.f32 %v439, %v521
        %v526 = vadd.f32 %v440, %v522
        %v527 = vadd.f32 %v441, %v523
        %v528 = vld [vmem:[#allocation2] sm:$0xff]
        %v529 = vld [vmem:[#allocation2 + $0x8] sm:$0xf]
        %v530 = vld [vmem:[#allocation2 + $0xc] sm:$0xff]
        %v531 = vld [vmem:[#allocation2 + $0x14] sm:$0xf]
        %532 = vset.pattern.permute.xlu0 7
        %533 = vperm.xlu0 %532, %v242
        %v534 = vpop.permute.xlu0 %533
        %v540 = vcombine.high %v528, %v528
        %v541 = vcombine.high %v530, %v530
        %542 = vrot.lane.b32.xlu0 %v528, 121
        %v543 = vpop.permute.xlu0 %542
        %544 = vrot.lane.b32.xlu0 %v540, 121
        %v545 = vpop.permute.xlu0 %544
        %546 = vrot.lane.b32.xlu0 %v529, 121
        %v547 = vpop.permute.xlu0 %546
        %548 = vrot.lane.b32.xlu0 %v530, 121
        %v549 = vpop.permute.xlu0 %548
        %550 = vrot.lane.b32.xlu0 %v541, 121
        %v551 = vpop.permute.xlu0 %550
        %552 = vrot.lane.b32.xlu0 %v531, 121
        %v553 = vpop.permute.xlu0 %552
        %vm554 = vcmask 990208
        %v555 = vsel %vm554, %v543, %v545
        %v556 = vsel %vm554, %v545, %v547
        %v557 = vsel %vm554, %v549, %v551
        %v558 = vsel %vm554, %v551, %v553
        %v563 = vmul.f32 %v534, %v555
        %v564 = vmul.f32 %v534, %v556
        %v565 = vmul.f32 %v534, %v557
        %v566 = vmul.f32 %v534, %v558
        %v567 = vadd.f32 %v481, %v563
        %v568 = vadd.f32 %v482, %v564
        %v569 = vadd.f32 %v483, %v565
        %v570 = vadd.f32 %v484, %v566
        %v571 = vld [vmem:[#allocation2] sm:$0xff]
        %v572 = vld [vmem:[#allocation2 + $0x8] sm:$0xf]
        %v573 = vld [vmem:[#allocation2 + $0xc] sm:$0xff]
        %v574 = vld [vmem:[#allocation2 + $0x14] sm:$0xf]
        %575 = vset.pattern.permute.xlu0 8
        %576 = vperm.xlu0 %575, %v242
        %v577 = vpop.permute.xlu0 %576
        %v583 = vcombine.high %v571, %v571
        %v584 = vcombine.high %v573, %v573
        %585 = vrot.lane.b32.xlu0 %v571, 120
        %v586 = vpop.permute.xlu0 %585
        %587 = vrot.lane.b32.xlu0 %v583, 120
        %v588 = vpop.permute.xlu0 %587
        %589 = vrot.lane.b32.xlu0 %v572, 120
        %v590 = vpop.permute.xlu0 %589
        %591 = vrot.lane.b32.xlu0 %v573, 120
        %v592 = vpop.permute.xlu0 %591
        %593 = vrot.lane.b32.xlu0 %v584, 120
        %v594 = vpop.permute.xlu0 %593
        %595 = vrot.lane.b32.xlu0 %v574, 120
        %v596 = vpop.permute.xlu0 %595
        %vm597 = vcmask 982016
        %v598 = vsel %vm597, %v586, %v588
        %v599 = vsel %vm597, %v588, %v590
        %v600 = vsel %vm597, %v592, %v594
        %v601 = vsel %vm597, %v594, %v596
        %v606 = vmul.f32 %v577, %v598
        %v607 = vmul.f32 %v577, %v599
        %v608 = vmul.f32 %v577, %v600
        %v609 = vmul.f32 %v577, %v601
        %v610 = vadd.f32 %v524, %v606
        %v611 = vadd.f32 %v525, %v607
        %v612 = vadd.f32 %v526, %v608
        %v613 = vadd.f32 %v527, %v609
        %v614 = vld [vmem:[#allocation2] sm:$0xff]
        %v615 = vld [vmem:[#allocation2 + $0x8] sm:$0xf]
        %v616 = vld [vmem:[#allocation2 + $0xc] sm:$0xff]
        %v617 = vld [vmem:[#allocation2 + $0x14] sm:$0xf]
        %618 = vset.pattern.permute.xlu0 9
        %619 = vperm.xlu0 %618, %v242
        %v620 = vpop.permute.xlu0 %619
        %v626 = vcombine.high %v614, %v614
        %v627 = vcombine.high %v616, %v616
        %628 = vrot.lane.b32.xlu0 %v614, 119
        %v629 = vpop.permute.xlu0 %628
        %630 = vrot.lane.b32.xlu0 %v626, 119
        %v631 = vpop.permute.xlu0 %630
        %632 = vrot.lane.b32.xlu0 %v615, 119
        %v633 = vpop.permute.xlu0 %632
        %634 = vrot.lane.b32.xlu0 %v616, 119
        %v635 = vpop.permute.xlu0 %634
        %636 = vrot.lane.b32.xlu0 %v627, 119
        %v637 = vpop.permute.xlu0 %636
        %638 = vrot.lane.b32.xlu0 %v617, 119
        %v639 = vpop.permute.xlu0 %638
        %vm640 = vcmask 973824
        %v641 = vsel %vm640, %v629, %v631
        %v642 = vsel %vm640, %v631, %v633
        %v643 = vsel %vm640, %v635, %v637
        %v644 = vsel %vm640, %v637, %v639
        %v649 = vmul.f32 %v620, %v641
        %v650 = vmul.f32 %v620, %v642
        %v651 = vmul.f32 %v620, %v643
        %v652 = vmul.f32 %v620, %v644
        %v653 = vadd.f32 %v567, %v649
        %v654 = vadd.f32 %v568, %v650
        %v655 = vadd.f32 %v569, %v651
        %v656 = vadd.f32 %v570, %v652
        %v657 = vld [vmem:[#allocation2] sm:$0xff]
        %v658 = vld [vmem:[#allocation2 + $0x8] sm:$0xf]
        %v659 = vld [vmem:[#allocation2 + $0xc] sm:$0xff]
        %v660 = vld [vmem:[#allocation2 + $0x14] sm:$0xf]
        %661 = vset.pattern.permute.xlu0 10
        %662 = vperm.xlu0 %661, %v242
        %v663 = vpop.permute.xlu0 %662
        %v669 = vcombine.high %v657, %v657
        %v670 = vcombine.high %v659, %v659
        %671 = vrot.lane.b32.xlu0 %v657, 118
        %v672 = vpop.permute.xlu0 %671
        %673 = vrot.lane.b32.xlu0 %v669, 118
        %v674 = vpop.permute.xlu0 %673
        %675 = vrot.lane.b32.xlu0 %v658, 118
        %v676 = vpop.permute.xlu0 %675
        %677 = vrot.lane.b32.xlu0 %v659, 118
        %v678 = vpop.permute.xlu0 %677
        %679 = vrot.lane.b32.xlu0 %v670, 118
        %v680 = vpop.permute.xlu0 %679
        %681 = vrot.lane.b32.xlu0 %v660, 118
        %v682 = vpop.permute.xlu0 %681
        %vm683 = vcmask 965632
        %v684 = vsel %vm683, %v672, %v674
        %v685 = vsel %vm683, %v674, %v676
        %v686 = vsel %vm683, %v678, %v680
        %v687 = vsel %vm683, %v680, %v682
        %v692 = vmul.f32 %v663, %v684
        %v693 = vmul.f32 %v663, %v685
        %v694 = vmul.f32 %v663, %v686
        %v695 = vmul.f32 %v663, %v687
        %v696 = vadd.f32 %v610, %v692
        %v697 = vadd.f32 %v611, %v693
        %v698 = vadd.f32 %v612, %v694
        %v699 = vadd.f32 %v613, %v695
        %v700 = vld [vmem:[#allocation2] sm:$0xff]
        %v701 = vld [vmem:[#allocation2 + $0x8] sm:$0xf]
        %v702 = vld [vmem:[#allocation2 + $0xc] sm:$0xff]
        %v703 = vld [vmem:[#allocation2 + $0x14] sm:$0xf]
        %704 = vset.pattern.permute.xlu0 11
        %705 = vperm.xlu0 %704, %v242
        %v706 = vpop.permute.xlu0 %705
        %v712 = vcombine.high %v700, %v700
        %v713 = vcombine.high %v702, %v702
        %714 = vrot.lane.b32.xlu0 %v700, 117
        %v715 = vpop.permute.xlu0 %714
        %716 = vrot.lane.b32.xlu0 %v712, 117
        %v717 = vpop.permute.xlu0 %716
        %718 = vrot.lane.b32.xlu0 %v701, 117
        %v719 = vpop.permute.xlu0 %718
        %720 = vrot.lane.b32.xlu0 %v702, 117
        %v721 = vpop.permute.xlu0 %720
        %722 = vrot.lane.b32.xlu0 %v713, 117
        %v723 = vpop.permute.xlu0 %722
        %724 = vrot.lane.b32.xlu0 %v703, 117
        %v725 = vpop.permute.xlu0 %724
        %vm726 = vcmask 957440
        %v727 = vsel %vm726, %v715, %v717
        %v728 = vsel %vm726, %v717, %v719
        %v729 = vsel %vm726, %v721, %v723
        %v730 = vsel %vm726, %v723, %v725
        %v735 = vmul.f32 %v706, %v727
        %v736 = vmul.f32 %v706, %v728
        %v737 = vmul.f32 %v706, %v729
        %v738 = vmul.f32 %v706, %v730
        %v739 = vadd.f32 %v653, %v735
        %v740 = vadd.f32 %v654, %v736
        %v741 = vadd.f32 %v655, %v737
        %v742 = vadd.f32 %v656, %v738
        %v743 = vld [vmem:[#allocation2] sm:$0xff]
        %v744 = vld [vmem:[#allocation2 + $0x8] sm:$0xf]
        %v745 = vld [vmem:[#allocation2 + $0xc] sm:$0xff]
        %v746 = vld [vmem:[#allocation2 + $0x14] sm:$0xf]
        %747 = vset.pattern.permute.xlu0 12
        %748 = vperm.xlu0 %747, %v242
        %v749 = vpop.permute.xlu0 %748
        %v755 = vcombine.high %v743, %v743
        %v756 = vcombine.high %v745, %v745
        %757 = vrot.lane.b32.xlu0 %v743, 116
        %v758 = vpop.permute.xlu0 %757
        %759 = vrot.lane.b32.xlu0 %v755, 116
        %v760 = vpop.permute.xlu0 %759
        %761 = vrot.lane.b32.xlu0 %v744, 116
        %v762 = vpop.permute.xlu0 %761
        %763 = vrot.lane.b32.xlu0 %v745, 116
        %v764 = vpop.permute.xlu0 %763
        %765 = vrot.lane.b32.xlu0 %v756, 116
        %v766 = vpop.permute.xlu0 %765
        %767 = vrot.lane.b32.xlu0 %v746, 116
        %v768 = vpop.permute.xlu0 %767
        %vm769 = vcmask 949248
        %v770 = vsel %vm769, %v758, %v760
        %v771 = vsel %vm769, %v760, %v762
        %v772 = vsel %vm769, %v764, %v766
        %v773 = vsel %vm769, %v766, %v768
        %v778 = vmul.f32 %v749, %v770
        %v779 = vmul.f32 %v749, %v771
        %v780 = vmul.f32 %v749, %v772
        %v781 = vmul.f32 %v749, %v773
        %v782 = vadd.f32 %v696, %v778
        %v783 = vadd.f32 %v697, %v779
        %v784 = vadd.f32 %v698, %v780
        %v785 = vadd.f32 %v699, %v781
        %v786 = vld [vmem:[#allocation2] sm:$0xff]
        %v787 = vld [vmem:[#allocation2 + $0x8] sm:$0xf]
        %v788 = vld [vmem:[#allocation2 + $0xc] sm:$0xff]
        %v789 = vld [vmem:[#allocation2 + $0x14] sm:$0xf]
        %790 = vset.pattern.permute.xlu0 13
        %791 = vperm.xlu0 %790, %v242
        %v792 = vpop.permute.xlu0 %791
        %v798 = vcombine.high %v786, %v786
        %v799 = vcombine.high %v788, %v788
        %800 = vrot.lane.b32.xlu0 %v786, 115
        %v801 = vpop.permute.xlu0 %800
        %802 = vrot.lane.b32.xlu0 %v798, 115
        %v803 = vpop.permute.xlu0 %802
        %804 = vrot.lane.b32.xlu0 %v787, 115
        %v805 = vpop.permute.xlu0 %804
        %806 = vrot.lane.b32.xlu0 %v788, 115
        %v807 = vpop.permute.xlu0 %806
        %808 = vrot.lane.b32.xlu0 %v799, 115
        %v809 = vpop.permute.xlu0 %808
        %810 = vrot.lane.b32.xlu0 %v789, 115
        %v811 = vpop.permute.xlu0 %810
        %vm812 = vcmask 941056
        %v813 = vsel %vm812, %v801, %v803
        %v814 = vsel %vm812, %v803, %v805
        %v815 = vsel %vm812, %v807, %v809
        %v816 = vsel %vm812, %v809, %v811
        %v821 = vmul.f32 %v792, %v813
        %v822 = vmul.f32 %v792, %v814
        %v823 = vmul.f32 %v792, %v815
        %v824 = vmul.f32 %v792, %v816
        %v825 = vadd.f32 %v739, %v821
        %v826 = vadd.f32 %v740, %v822
        %v827 = vadd.f32 %v741, %v823
        %v828 = vadd.f32 %v742, %v824
        %v829 = vld [vmem:[#allocation2] sm:$0xff]
        %v830 = vld [vmem:[#allocation2 + $0x8] sm:$0xf]
        %v831 = vld [vmem:[#allocation2 + $0xc] sm:$0xff]
        %v832 = vld [vmem:[#allocation2 + $0x14] sm:$0xf]
        %833 = vset.pattern.permute.xlu0 14
        %834 = vperm.xlu0 %833, %v242
        %v835 = vpop.permute.xlu0 %834
        %v841 = vcombine.high %v829, %v829
        %v842 = vcombine.high %v831, %v831
        %843 = vrot.lane.b32.xlu0 %v829, 114
        %v844 = vpop.permute.xlu0 %843
        %845 = vrot.lane.b32.xlu0 %v841, 114
        %v846 = vpop.permute.xlu0 %845
        %847 = vrot.lane.b32.xlu0 %v830, 114
        %v848 = vpop.permute.xlu0 %847
        %849 = vrot.lane.b32.xlu0 %v831, 114
        %v850 = vpop.permute.xlu0 %849
        %851 = vrot.lane.b32.xlu0 %v842, 114
        %v852 = vpop.permute.xlu0 %851
        %853 = vrot.lane.b32.xlu0 %v832, 114
        %v854 = vpop.permute.xlu0 %853
        %vm855 = vcmask 932864
        %v856 = vsel %vm855, %v844, %v846
        %v857 = vsel %vm855, %v846, %v848
        %v858 = vsel %vm855, %v850, %v852
        %v859 = vsel %vm855, %v852, %v854
        %v864 = vmul.f32 %v835, %v856
        %v865 = vmul.f32 %v835, %v857
        %v866 = vmul.f32 %v835, %v858
        %v867 = vmul.f32 %v835, %v859
        %v868 = vadd.f32 %v782, %v864
        %v869 = vadd.f32 %v783, %v865
        %v870 = vadd.f32 %v784, %v866
        %v871 = vadd.f32 %v785, %v867
        %v872 = vld [vmem:[#allocation2] sm:$0xff]
        %v873 = vld [vmem:[#allocation2 + $0x8] sm:$0xf]
        %v874 = vld [vmem:[#allocation2 + $0xc] sm:$0xff]
        %v875 = vld [vmem:[#allocation2 + $0x14] sm:$0xf]
        %876 = vset.pattern.permute.xlu0 15
        %877 = vperm.xlu0 %876, %v242
        %v878 = vpop.permute.xlu0 %877
        %v884 = vcombine.high %v872, %v872
        %v885 = vcombine.high %v874, %v874
        %886 = vrot.lane.b32.xlu0 %v872, 113
        %v887 = vpop.permute.xlu0 %886
        %888 = vrot.lane.b32.xlu0 %v884, 113
        %v889 = vpop.permute.xlu0 %888
        %890 = vrot.lane.b32.xlu0 %v873, 113
        %v891 = vpop.permute.xlu0 %890
        %892 = vrot.lane.b32.xlu0 %v874, 113
        %v893 = vpop.permute.xlu0 %892
        %894 = vrot.lane.b32.xlu0 %v885, 113
        %v895 = vpop.permute.xlu0 %894
        %896 = vrot.lane.b32.xlu0 %v875, 113
        %v897 = vpop.permute.xlu0 %896
        %vm898 = vcmask 924672
        %v899 = vsel %vm898, %v887, %v889
        %v900 = vsel %vm898, %v889, %v891
        %v901 = vsel %vm898, %v893, %v895
        %v902 = vsel %vm898, %v895, %v897
        %v907 = vmul.f32 %v878, %v899
        %v908 = vmul.f32 %v878, %v900
        %v909 = vmul.f32 %v878, %v901
        %v910 = vmul.f32 %v878, %v902
        %v911 = vadd.f32 %v825, %v907
        %v912 = vadd.f32 %v826, %v908
        %v913 = vadd.f32 %v827, %v909
        %v914 = vadd.f32 %v828, %v910
        %v915 = vld [vmem:[#allocation2] sm:$0xff]
        %v916 = vld [vmem:[#allocation2 + $0x8] sm:$0xf]
        %v917 = vld [vmem:[#allocation2 + $0xc] sm:$0xff]
        %v918 = vld [vmem:[#allocation2 + $0x14] sm:$0xf]
        %919 = vset.pattern.permute.xlu0 16
        %920 = vperm.xlu0 %919, %v242
        %v921 = vpop.permute.xlu0 %920
        %v927 = vcombine.high %v915, %v915
        %v928 = vcombine.high %v917, %v917
        %929 = vrot.lane.b32.xlu0 %v915, 112
        %v930 = vpop.permute.xlu0 %929
        %931 = vrot.lane.b32.xlu0 %v927, 112
        %v932 = vpop.permute.xlu0 %931
        %933 = vrot.lane.b32.xlu0 %v916, 112
        %v934 = vpop.permute.xlu0 %933
        %935 = vrot.lane.b32.xlu0 %v917, 112
        %v936 = vpop.permute.xlu0 %935
        %937 = vrot.lane.b32.xlu0 %v928, 112
        %v938 = vpop.permute.xlu0 %937
        %939 = vrot.lane.b32.xlu0 %v918, 112
        %v940 = vpop.permute.xlu0 %939
        %vm941 = vcmask 916480
        %v942 = vsel %vm941, %v930, %v932
        %v943 = vsel %vm941, %v932, %v934
        %v944 = vsel %vm941, %v936, %v938
        %v945 = vsel %vm941, %v938, %v940
        %v950 = vmul.f32 %v921, %v942
        %v951 = vmul.f32 %v921, %v943
        %v952 = vmul.f32 %v921, %v944
        %v953 = vmul.f32 %v921, %v945
        %v954 = vadd.f32 %v868, %v950
        %v955 = vadd.f32 %v869, %v951
        %v956 = vadd.f32 %v870, %v952
        %v957 = vadd.f32 %v871, %v953
        %v958 = vld [vmem:[#allocation2] sm:$0xff]
        %v959 = vld [vmem:[#allocation2 + $0x8] sm:$0xf]
        %v960 = vld [vmem:[#allocation2 + $0xc] sm:$0xff]
        %v961 = vld [vmem:[#allocation2 + $0x14] sm:$0xf]
        %962 = vset.pattern.permute.xlu0 17
        %963 = vperm.xlu0 %962, %v242
        %v964 = vpop.permute.xlu0 %963
        %v970 = vcombine.high %v958, %v958
        %v971 = vcombine.high %v960, %v960
        %972 = vrot.lane.b32.xlu0 %v958, 111
        %v973 = vpop.permute.xlu0 %972
        %974 = vrot.lane.b32.xlu0 %v970, 111
        %v975 = vpop.permute.xlu0 %974
        %976 = vrot.lane.b32.xlu0 %v959, 111
        %v977 = vpop.permute.xlu0 %976
        %978 = vrot.lane.b32.xlu0 %v960, 111
        %v979 = vpop.permute.xlu0 %978
        %980 = vrot.lane.b32.xlu0 %v971, 111
        %v981 = vpop.permute.xlu0 %980
        %982 = vrot.lane.b32.xlu0 %v961, 111
        %v983 = vpop.permute.xlu0 %982
        %vm984 = vcmask 908288
        %v985 = vsel %vm984, %v973, %v975
        %v986 = vsel %vm984, %v975, %v977
        %v987 = vsel %vm984, %v979, %v981
        %v988 = vsel %vm984, %v981, %v983
        %v993 = vmul.f32 %v964, %v985
        %v994 = vmul.f32 %v964, %v986
        %v995 = vmul.f32 %v964, %v987
        %v996 = vmul.f32 %v964, %v988
        %v997 = vadd.f32 %v911, %v993
        %v998 = vadd.f32 %v912, %v994
        %v999 = vadd.f32 %v913, %v995
        %v1000 = vadd.f32 %v914, %v996
        %v1001 = vld [vmem:[#allocation2] sm:$0xff]
        %v1002 = vld [vmem:[#allocation2 + $0x8] sm:$0xf]
        %v1003 = vld [vmem:[#allocation2 + $0xc] sm:$0xff]
        %v1004 = vld [vmem:[#allocation2 + $0x14] sm:$0xf]
        %1005 = vset.pattern.permute.xlu0 18
        %1006 = vperm.xlu0 %1005, %v242
        %v1007 = vpop.permute.xlu0 %1006
        %v1013 = vcombine.high %v1001, %v1001
        %v1014 = vcombine.high %v1003, %v1003
        %1015 = vrot.lane.b32.xlu0 %v1001, 110
        %v1016 = vpop.permute.xlu0 %1015
        %1017 = vrot.lane.b32.xlu0 %v1013, 110
        %v1018 = vpop.permute.xlu0 %1017
        %1019 = vrot.lane.b32.xlu0 %v1002, 110
        %v1020 = vpop.permute.xlu0 %1019
        %1021 = vrot.lane.b32.xlu0 %v1003, 110
        %v1022 = vpop.permute.xlu0 %1021
        %1023 = vrot.lane.b32.xlu0 %v1014, 110
        %v1024 = vpop.permute.xlu0 %1023
        %1025 = vrot.lane.b32.xlu0 %v1004, 110
        %v1026 = vpop.permute.xlu0 %1025
        %vm1027 = vcmask 900096
        %v1028 = vsel %vm1027, %v1016, %v1018
        %v1029 = vsel %vm1027, %v1018, %v1020
        %v1030 = vsel %vm1027, %v1022, %v1024
        %v1031 = vsel %vm1027, %v1024, %v1026
        %v1036 = vmul.f32 %v1007, %v1028
        %v1037 = vmul.f32 %v1007, %v1029
        %v1038 = vmul.f32 %v1007, %v1030
        %v1039 = vmul.f32 %v1007, %v1031
        %v1040 = vadd.f32 %v954, %v1036
        %v1041 = vadd.f32 %v955, %v1037
        %v1042 = vadd.f32 %v956, %v1038
        %v1043 = vadd.f32 %v957, %v1039
        %v1044 = vld [vmem:[#allocation2] sm:$0xff]
        %v1045 = vld [vmem:[#allocation2 + $0x8] sm:$0xf]
        %v1046 = vld [vmem:[#allocation2 + $0xc] sm:$0xff]
        %v1047 = vld [vmem:[#allocation2 + $0x14] sm:$0xf]
        %1048 = vset.pattern.permute.xlu0 19
        %1049 = vperm.xlu0 %1048, %v242
        %v1050 = vpop.permute.xlu0 %1049
        %v1056 = vcombine.high %v1044, %v1044
        %v1057 = vcombine.high %v1046, %v1046
        %1058 = vrot.lane.b32.xlu0 %v1044, 109
        %v1059 = vpop.permute.xlu0 %1058
        %1060 = vrot.lane.b32.xlu0 %v1056, 109
        %v1061 = vpop.permute.xlu0 %1060
        %1062 = vrot.lane.b32.xlu0 %v1045, 109
        %v1063 = vpop.permute.xlu0 %1062
        %1064 = vrot.lane.b32.xlu0 %v1046, 109
        %v1065 = vpop.permute.xlu0 %1064
        %1066 = vrot.lane.b32.xlu0 %v1057, 109
        %v1067 = vpop.permute.xlu0 %1066
        %1068 = vrot.lane.b32.xlu0 %v1047, 109
        %v1069 = vpop.permute.xlu0 %1068
        %vm1070 = vcmask 891904
        %v1071 = vsel %vm1070, %v1059, %v1061
        %v1072 = vsel %vm1070, %v1061, %v1063
        %v1073 = vsel %vm1070, %v1065, %v1067
        %v1074 = vsel %vm1070, %v1067, %v1069
        %v1079 = vmul.f32 %v1050, %v1071
        %v1080 = vmul.f32 %v1050, %v1072
        %v1081 = vmul.f32 %v1050, %v1073
        %v1082 = vmul.f32 %v1050, %v1074
        %v1083 = vadd.f32 %v997, %v1079
        %v1084 = vadd.f32 %v998, %v1080
        %v1085 = vadd.f32 %v999, %v1081
        %v1086 = vadd.f32 %v1000, %v1082
        %v1087 = vld [vmem:[#allocation2] sm:$0xff]
        %v1088 = vld [vmem:[#allocation2 + $0x8] sm:$0xf]
        %v1089 = vld [vmem:[#allocation2 + $0xc] sm:$0xff]
        %v1090 = vld [vmem:[#allocation2 + $0x14] sm:$0xf]
        %1091 = vset.pattern.permute.xlu0 20
        %1092 = vperm.xlu0 %1091, %v242
        %v1093 = vpop.permute.xlu0 %1092
        %v1099 = vcombine.high %v1087, %v1087
        %v1100 = vcombine.high %v1089, %v1089
        %1101 = vrot.lane.b32.xlu0 %v1087, 108
        %v1102 = vpop.permute.xlu0 %1101
        %1103 = vrot.lane.b32.xlu0 %v1099, 108
        %v1104 = vpop.permute.xlu0 %1103
        %1105 = vrot.lane.b32.xlu0 %v1088, 108
        %v1106 = vpop.permute.xlu0 %1105
        %1107 = vrot.lane.b32.xlu0 %v1089, 108
        %v1108 = vpop.permute.xlu0 %1107
        %1109 = vrot.lane.b32.xlu0 %v1100, 108
        %v1110 = vpop.permute.xlu0 %1109
        %1111 = vrot.lane.b32.xlu0 %v1090, 108
        %v1112 = vpop.permute.xlu0 %1111
        %vm1113 = vcmask 883712
        %v1114 = vsel %vm1113, %v1102, %v1104
        %v1115 = vsel %vm1113, %v1104, %v1106
        %v1116 = vsel %vm1113, %v1108, %v1110
        %v1117 = vsel %vm1113, %v1110, %v1112
        %v1122 = vmul.f32 %v1093, %v1114
        %v1123 = vmul.f32 %v1093, %v1115
        %v1124 = vmul.f32 %v1093, %v1116
        %v1125 = vmul.f32 %v1093, %v1117
        %v1126 = vadd.f32 %v1040, %v1122
        %v1127 = vadd.f32 %v1041, %v1123
        %v1128 = vadd.f32 %v1042, %v1124
        %v1129 = vadd.f32 %v1043, %v1125
        %v1130 = vld [vmem:[#allocation2] sm:$0xff]
        %v1131 = vld [vmem:[#allocation2 + $0x8] sm:$0xf]
        %v1132 = vld [vmem:[#allocation2 + $0xc] sm:$0xff]
        %v1133 = vld [vmem:[#allocation2 + $0x14] sm:$0xf]
        %1134 = vset.pattern.permute.xlu0 21
        %1135 = vperm.xlu0 %1134, %v242
        %v1136 = vpop.permute.xlu0 %1135
        %v1142 = vcombine.high %v1130, %v1130
        %v1143 = vcombine.high %v1132, %v1132
        %1144 = vrot.lane.b32.xlu0 %v1130, 107
        %v1145 = vpop.permute.xlu0 %1144
        %1146 = vrot.lane.b32.xlu0 %v1142, 107
        %v1147 = vpop.permute.xlu0 %1146
        %1148 = vrot.lane.b32.xlu0 %v1131, 107
        %v1149 = vpop.permute.xlu0 %1148
        %1150 = vrot.lane.b32.xlu0 %v1132, 107
        %v1151 = vpop.permute.xlu0 %1150
        %1152 = vrot.lane.b32.xlu0 %v1143, 107
        %v1153 = vpop.permute.xlu0 %1152
        %1154 = vrot.lane.b32.xlu0 %v1133, 107
        %v1155 = vpop.permute.xlu0 %1154
        %vm1156 = vcmask 875520
        %v1157 = vsel %vm1156, %v1145, %v1147
        %v1158 = vsel %vm1156, %v1147, %v1149
        %v1159 = vsel %vm1156, %v1151, %v1153
        %v1160 = vsel %vm1156, %v1153, %v1155
        %v1165 = vmul.f32 %v1136, %v1157
        %v1166 = vmul.f32 %v1136, %v1158
        %v1167 = vmul.f32 %v1136, %v1159
        %v1168 = vmul.f32 %v1136, %v1160
        %v1169 = vadd.f32 %v1083, %v1165
        %v1170 = vadd.f32 %v1084, %v1166
        %v1171 = vadd.f32 %v1085, %v1167
        %v1172 = vadd.f32 %v1086, %v1168
        %v1173 = vld [vmem:[#allocation2] sm:$0xff]
        %v1174 = vld [vmem:[#allocation2 + $0x8] sm:$0xf]
        %v1175 = vld [vmem:[#allocation2 + $0xc] sm:$0xff]
        %v1176 = vld [vmem:[#allocation2 + $0x14] sm:$0xf]
        %1177 = vset.pattern.permute.xlu0 22
        %1178 = vperm.xlu0 %1177, %v242
        %v1179 = vpop.permute.xlu0 %1178
        %v1185 = vcombine.high %v1173, %v1173
        %v1186 = vcombine.high %v1175, %v1175
        %1187 = vrot.lane.b32.xlu0 %v1173, 106
        %v1188 = vpop.permute.xlu0 %1187
        %1189 = vrot.lane.b32.xlu0 %v1185, 106
        %v1190 = vpop.permute.xlu0 %1189
        %1191 = vrot.lane.b32.xlu0 %v1174, 106
        %v1192 = vpop.permute.xlu0 %1191
        %1193 = vrot.lane.b32.xlu0 %v1175, 106
        %v1194 = vpop.permute.xlu0 %1193
        %1195 = vrot.lane.b32.xlu0 %v1186, 106
        %v1196 = vpop.permute.xlu0 %1195
        %1197 = vrot.lane.b32.xlu0 %v1176, 106
        %v1198 = vpop.permute.xlu0 %1197
        %vm1199 = vcmask 867328
        %v1200 = vsel %vm1199, %v1188, %v1190
        %v1201 = vsel %vm1199, %v1190, %v1192
        %v1202 = vsel %vm1199, %v1194, %v1196
        %v1203 = vsel %vm1199, %v1196, %v1198
        %v1208 = vmul.f32 %v1179, %v1200
        %v1209 = vmul.f32 %v1179, %v1201
        %v1210 = vmul.f32 %v1179, %v1202
        %v1211 = vmul.f32 %v1179, %v1203
        %v1212 = vadd.f32 %v1126, %v1208
        %v1213 = vadd.f32 %v1127, %v1209
        %v1214 = vadd.f32 %v1128, %v1210
        %v1215 = vadd.f32 %v1129, %v1211
        %v1216 = vld [vmem:[#allocation2] sm:$0xff]
        %v1217 = vld [vmem:[#allocation2 + $0x8] sm:$0xf]
        %v1218 = vld [vmem:[#allocation2 + $0xc] sm:$0xff]
        %v1219 = vld [vmem:[#allocation2 + $0x14] sm:$0xf]
        %1220 = vset.pattern.permute.xlu0 23
        %1221 = vperm.xlu0 %1220, %v242
        %v1222 = vpop.permute.xlu0 %1221
        %v1228 = vcombine.high %v1216, %v1216
        %v1229 = vcombine.high %v1218, %v1218
        %1230 = vrot.lane.b32.xlu0 %v1216, 105
        %v1231 = vpop.permute.xlu0 %1230
        %1232 = vrot.lane.b32.xlu0 %v1228, 105
        %v1233 = vpop.permute.xlu0 %1232
        %1234 = vrot.lane.b32.xlu0 %v1217, 105
        %v1235 = vpop.permute.xlu0 %1234
        %1236 = vrot.lane.b32.xlu0 %v1218, 105
        %v1237 = vpop.permute.xlu0 %1236
        %1238 = vrot.lane.b32.xlu0 %v1229, 105
        %v1239 = vpop.permute.xlu0 %1238
        %1240 = vrot.lane.b32.xlu0 %v1219, 105
        %v1241 = vpop.permute.xlu0 %1240
        %vm1242 = vcmask 859136
        %v1243 = vsel %vm1242, %v1231, %v1233
        %v1244 = vsel %vm1242, %v1233, %v1235
        %v1245 = vsel %vm1242, %v1237, %v1239
        %v1246 = vsel %vm1242, %v1239, %v1241
        %v1251 = vmul.f32 %v1222, %v1243
        %v1252 = vmul.f32 %v1222, %v1244
        %v1253 = vmul.f32 %v1222, %v1245
        %v1254 = vmul.f32 %v1222, %v1246
        %v1255 = vadd.f32 %v1169, %v1251
        %v1256 = vadd.f32 %v1170, %v1252
        %v1257 = vadd.f32 %v1171, %v1253
        %v1258 = vadd.f32 %v1172, %v1254
        %v1259 = vld [vmem:[#allocation2] sm:$0xff]
        %v1260 = vld [vmem:[#allocation2 + $0x8] sm:$0xf]
        %v1261 = vld [vmem:[#allocation2 + $0xc] sm:$0xff]
        %v1262 = vld [vmem:[#allocation2 + $0x14] sm:$0xf]
        %1263 = vset.pattern.permute.xlu0 24
        %1264 = vperm.xlu0 %1263, %v242
        %v1265 = vpop.permute.xlu0 %1264
        %v1271 = vcombine.high %v1259, %v1259
        %v1272 = vcombine.high %v1261, %v1261
        %1273 = vrot.lane.b32.xlu0 %v1259, 104
        %v1274 = vpop.permute.xlu0 %1273
        %1275 = vrot.lane.b32.xlu0 %v1271, 104
        %v1276 = vpop.permute.xlu0 %1275
        %1277 = vrot.lane.b32.xlu0 %v1260, 104
        %v1278 = vpop.permute.xlu0 %1277
        %1279 = vrot.lane.b32.xlu0 %v1261, 104
        %v1280 = vpop.permute.xlu0 %1279
        %1281 = vrot.lane.b32.xlu0 %v1272, 104
        %v1282 = vpop.permute.xlu0 %1281
        %1283 = vrot.lane.b32.xlu0 %v1262, 104
        %v1284 = vpop.permute.xlu0 %1283
        %vm1285 = vcmask 850944
        %v1286 = vsel %vm1285, %v1274, %v1276
        %v1287 = vsel %vm1285, %v1276, %v1278
        %v1288 = vsel %vm1285, %v1280, %v1282
        %v1289 = vsel %vm1285, %v1282, %v1284
        %v1294 = vmul.f32 %v1265, %v1286
        %v1295 = vmul.f32 %v1265, %v1287
        %v1296 = vmul.f32 %v1265, %v1288
        %v1297 = vmul.f32 %v1265, %v1289
        %v1298 = vadd.f32 %v1212, %v1294
        %v1299 = vadd.f32 %v1213, %v1295
        %v1300 = vadd.f32 %v1214, %v1296
        %v1301 = vadd.f32 %v1215, %v1297
        %v1302 = vld [vmem:[#allocation2] sm:$0xff]
        %v1303 = vld [vmem:[#allocation2 + $0x8] sm:$0xf]
        %v1304 = vld [vmem:[#allocation2 + $0xc] sm:$0xff]
        %v1305 = vld [vmem:[#allocation2 + $0x14] sm:$0xf]
        %1306 = vset.pattern.permute.xlu0 25
        %1307 = vperm.xlu0 %1306, %v242
        %v1308 = vpop.permute.xlu0 %1307
        %v1314 = vcombine.high %v1302, %v1302
        %v1315 = vcombine.high %v1304, %v1304
        %1316 = vrot.lane.b32.xlu0 %v1302, 103
        %v1317 = vpop.permute.xlu0 %1316
        %1318 = vrot.lane.b32.xlu0 %v1314, 103
        %v1319 = vpop.permute.xlu0 %1318
        %1320 = vrot.lane.b32.xlu0 %v1303, 103
        %v1321 = vpop.permute.xlu0 %1320
        %1322 = vrot.lane.b32.xlu0 %v1304, 103
        %v1323 = vpop.permute.xlu0 %1322
        %1324 = vrot.lane.b32.xlu0 %v1315, 103
        %v1325 = vpop.permute.xlu0 %1324
        %1326 = vrot.lane.b32.xlu0 %v1305, 103
        %v1327 = vpop.permute.xlu0 %1326
        %vm1328 = vcmask 842752
        %v1329 = vsel %vm1328, %v1317, %v1319
        %v1330 = vsel %vm1328, %v1319, %v1321
        %v1331 = vsel %vm1328, %v1323, %v1325
        %v1332 = vsel %vm1328, %v1325, %v1327
        %v1337 = vmul.f32 %v1308, %v1329
        %v1338 = vmul.f32 %v1308, %v1330
        %v1339 = vmul.f32 %v1308, %v1331
        %v1340 = vmul.f32 %v1308, %v1332
        %v1341 = vadd.f32 %v1255, %v1337
        %v1342 = vadd.f32 %v1256, %v1338
        %v1343 = vadd.f32 %v1257, %v1339
        %v1344 = vadd.f32 %v1258, %v1340
        %v1345 = vld [vmem:[#allocation2] sm:$0xff]
        %v1346 = vld [vmem:[#allocation2 + $0x8] sm:$0xf]
        %v1347 = vld [vmem:[#allocation2 + $0xc] sm:$0xff]
        %v1348 = vld [vmem:[#allocation2 + $0x14] sm:$0xf]
        %1349 = vset.pattern.permute.xlu0 26
        %1350 = vperm.xlu0 %1349, %v242
        %v1351 = vpop.permute.xlu0 %1350
        %v1357 = vcombine.high %v1345, %v1345
        %v1358 = vcombine.high %v1347, %v1347
        %1359 = vrot.lane.b32.xlu0 %v1345, 102
        %v1360 = vpop.permute.xlu0 %1359
        %1361 = vrot.lane.b32.xlu0 %v1357, 102
        %v1362 = vpop.permute.xlu0 %1361
        %1363 = vrot.lane.b32.xlu0 %v1346, 102
        %v1364 = vpop.permute.xlu0 %1363
        %1365 = vrot.lane.b32.xlu0 %v1347, 102
        %v1366 = vpop.permute.xlu0 %1365
        %1367 = vrot.lane.b32.xlu0 %v1358, 102
        %v1368 = vpop.permute.xlu0 %1367
        %1369 = vrot.lane.b32.xlu0 %v1348, 102
        %v1370 = vpop.permute.xlu0 %1369
        %vm1371 = vcmask 834560
        %v1372 = vsel %vm1371, %v1360, %v1362
        %v1373 = vsel %vm1371, %v1362, %v1364
        %v1374 = vsel %vm1371, %v1366, %v1368
        %v1375 = vsel %vm1371, %v1368, %v1370
        %v1380 = vmul.f32 %v1351, %v1372
        %v1381 = vmul.f32 %v1351, %v1373
        %v1382 = vmul.f32 %v1351, %v1374
        %v1383 = vmul.f32 %v1351, %v1375
        %v1384 = vadd.f32 %v1298, %v1380
        %v1385 = vadd.f32 %v1299, %v1381
        %v1386 = vadd.f32 %v1300, %v1382
        %v1387 = vadd.f32 %v1301, %v1383
        %v1388 = vld [vmem:[#allocation2] sm:$0xff]
        %v1389 = vld [vmem:[#allocation2 + $0x8] sm:$0xf]
        %v1390 = vld [vmem:[#allocation2 + $0xc] sm:$0xff]
        %v1391 = vld [vmem:[#allocation2 + $0x14] sm:$0xf]
        %1392 = vset.pattern.permute.xlu0 27
        %1393 = vperm.xlu0 %1392, %v242
        %v1394 = vpop.permute.xlu0 %1393
        %v1400 = vcombine.high %v1388, %v1388
        %v1401 = vcombine.high %v1390, %v1390
        %1402 = vrot.lane.b32.xlu0 %v1388, 101
        %v1403 = vpop.permute.xlu0 %1402
        %1404 = vrot.lane.b32.xlu0 %v1400, 101
        %v1405 = vpop.permute.xlu0 %1404
        %1406 = vrot.lane.b32.xlu0 %v1389, 101
        %v1407 = vpop.permute.xlu0 %1406
        %1408 = vrot.lane.b32.xlu0 %v1390, 101
        %v1409 = vpop.permute.xlu0 %1408
        %1410 = vrot.lane.b32.xlu0 %v1401, 101
        %v1411 = vpop.permute.xlu0 %1410
        %1412 = vrot.lane.b32.xlu0 %v1391, 101
        %v1413 = vpop.permute.xlu0 %1412
        %vm1414 = vcmask 826368
        %v1415 = vsel %vm1414, %v1403, %v1405
        %v1416 = vsel %vm1414, %v1405, %v1407
        %v1417 = vsel %vm1414, %v1409, %v1411
        %v1418 = vsel %vm1414, %v1411, %v1413
        %v1423 = vmul.f32 %v1394, %v1415
        %v1424 = vmul.f32 %v1394, %v1416
        %v1425 = vmul.f32 %v1394, %v1417
        %v1426 = vmul.f32 %v1394, %v1418
        %v1427 = vadd.f32 %v1341, %v1423
        %v1428 = vadd.f32 %v1342, %v1424
        %v1429 = vadd.f32 %v1343, %v1425
        %v1430 = vadd.f32 %v1344, %v1426
        %v1431 = vld [vmem:[#allocation2] sm:$0xff]
        %v1432 = vld [vmem:[#allocation2 + $0x8] sm:$0xf]
        %v1433 = vld [vmem:[#allocation2 + $0xc] sm:$0xff]
        %v1434 = vld [vmem:[#allocation2 + $0x14] sm:$0xf]
        %1435 = vset.pattern.permute.xlu0 28
        %1436 = vperm.xlu0 %1435, %v242
        %v1437 = vpop.permute.xlu0 %1436
        %v1443 = vcombine.high %v1431, %v1431
        %v1444 = vcombine.high %v1433, %v1433
        %1445 = vrot.lane.b32.xlu0 %v1431, 100
        %v1446 = vpop.permute.xlu0 %1445
        %1447 = vrot.lane.b32.xlu0 %v1443, 100
        %v1448 = vpop.permute.xlu0 %1447
        %1449 = vrot.lane.b32.xlu0 %v1432, 100
        %v1450 = vpop.permute.xlu0 %1449
        %1451 = vrot.lane.b32.xlu0 %v1433, 100
        %v1452 = vpop.permute.xlu0 %1451
        %1453 = vrot.lane.b32.xlu0 %v1444, 100
        %v1454 = vpop.permute.xlu0 %1453
        %1455 = vrot.lane.b32.xlu0 %v1434, 100
        %v1456 = vpop.permute.xlu0 %1455
        %vm1457 = vcmask 818176
        %v1458 = vsel %vm1457, %v1446, %v1448
        %v1459 = vsel %vm1457, %v1448, %v1450
        %v1460 = vsel %vm1457, %v1452, %v1454
        %v1461 = vsel %vm1457, %v1454, %v1456
        %v1466 = vmul.f32 %v1437, %v1458
        %v1467 = vmul.f32 %v1437, %v1459
        %v1468 = vmul.f32 %v1437, %v1460
        %v1469 = vmul.f32 %v1437, %v1461
        %v1470 = vadd.f32 %v1384, %v1466
        %v1471 = vadd.f32 %v1385, %v1467
        %v1472 = vadd.f32 %v1386, %v1468
        %v1473 = vadd.f32 %v1387, %v1469
        %v1474 = vld [vmem:[#allocation2] sm:$0xff]
        %v1475 = vld [vmem:[#allocation2 + $0x8] sm:$0xf]
        %v1476 = vld [vmem:[#allocation2 + $0xc] sm:$0xff]
        %v1477 = vld [vmem:[#allocation2 + $0x14] sm:$0xf]
        %1478 = vset.pattern.permute.xlu0 29
        %1479 = vperm.xlu0 %1478, %v242
        %v1480 = vpop.permute.xlu0 %1479
        %v1486 = vcombine.high %v1474, %v1474
        %v1487 = vcombine.high %v1476, %v1476
        %1488 = vrot.lane.b32.xlu0 %v1474, 99
        %v1489 = vpop.permute.xlu0 %1488
        %1490 = vrot.lane.b32.xlu0 %v1486, 99
        %v1491 = vpop.permute.xlu0 %1490
        %1492 = vrot.lane.b32.xlu0 %v1475, 99
        %v1493 = vpop.permute.xlu0 %1492
        %1494 = vrot.lane.b32.xlu0 %v1476, 99
        %v1495 = vpop.permute.xlu0 %1494
        %1496 = vrot.lane.b32.xlu0 %v1487, 99
        %v1497 = vpop.permute.xlu0 %1496
        %1498 = vrot.lane.b32.xlu0 %v1477, 99
        %v1499 = vpop.permute.xlu0 %1498
        %vm1500 = vcmask 809984
        %v1501 = vsel %vm1500, %v1489, %v1491
        %v1502 = vsel %vm1500, %v1491, %v1493
        %v1503 = vsel %vm1500, %v1495, %v1497
        %v1504 = vsel %vm1500, %v1497, %v1499
        %v1509 = vmul.f32 %v1480, %v1501
        %v1510 = vmul.f32 %v1480, %v1502
        %v1511 = vmul.f32 %v1480, %v1503
        %v1512 = vmul.f32 %v1480, %v1504
        %v1513 = vadd.f32 %v1427, %v1509
        %v1514 = vadd.f32 %v1428, %v1510
        %v1515 = vadd.f32 %v1429, %v1511
        %v1516 = vadd.f32 %v1430, %v1512
        %v1517 = vld [vmem:[#allocation2] sm:$0xff]
        %v1518 = vld [vmem:[#allocation2 + $0x8] sm:$0xf]
        %v1519 = vld [vmem:[#allocation2 + $0xc] sm:$0xff]
        %v1520 = vld [vmem:[#allocation2 + $0x14] sm:$0xf]
        %1521 = vset.pattern.permute.xlu0 30
        %1522 = vperm.xlu0 %1521, %v242
        %v1523 = vpop.permute.xlu0 %1522
        %v1529 = vcombine.high %v1517, %v1517
        %v1530 = vcombine.high %v1519, %v1519
        %1531 = vrot.lane.b32.xlu0 %v1517, 98
        %v1532 = vpop.permute.xlu0 %1531
        %1533 = vrot.lane.b32.xlu0 %v1529, 98
        %v1534 = vpop.permute.xlu0 %1533
        %1535 = vrot.lane.b32.xlu0 %v1518, 98
        %v1536 = vpop.permute.xlu0 %1535
        %1537 = vrot.lane.b32.xlu0 %v1519, 98
        %v1538 = vpop.permute.xlu0 %1537
        %1539 = vrot.lane.b32.xlu0 %v1530, 98
        %v1540 = vpop.permute.xlu0 %1539
        %1541 = vrot.lane.b32.xlu0 %v1520, 98
        %v1542 = vpop.permute.xlu0 %1541
        %vm1543 = vcmask 801792
        %v1544 = vsel %vm1543, %v1532, %v1534
        %v1545 = vsel %vm1543, %v1534, %v1536
        %v1546 = vsel %vm1543, %v1538, %v1540
        %v1547 = vsel %vm1543, %v1540, %v1542
        %v1552 = vmul.f32 %v1523, %v1544
        %v1553 = vmul.f32 %v1523, %v1545
        %v1554 = vmul.f32 %v1523, %v1546
        %v1555 = vmul.f32 %v1523, %v1547
        %v1556 = vadd.f32 %v1470, %v1552
        %v1557 = vadd.f32 %v1471, %v1553
        %v1558 = vadd.f32 %v1472, %v1554
        %v1559 = vadd.f32 %v1473, %v1555
        %v1560 = vld [vmem:[#allocation2] sm:$0xff]
        %v1561 = vld [vmem:[#allocation2 + $0x8] sm:$0xf]
        %v1562 = vld [vmem:[#allocation2 + $0xc] sm:$0xff]
        %v1563 = vld [vmem:[#allocation2 + $0x14] sm:$0xf]
        %1564 = vset.pattern.permute.xlu0 31
        %1565 = vperm.xlu0 %1564, %v242
        %v1566 = vpop.permute.xlu0 %1565
        %v1572 = vcombine.high %v1560, %v1560
        %v1573 = vcombine.high %v1562, %v1562
        %1574 = vrot.lane.b32.xlu0 %v1560, 97
        %v1575 = vpop.permute.xlu0 %1574
        %1576 = vrot.lane.b32.xlu0 %v1572, 97
        %v1577 = vpop.permute.xlu0 %1576
        %1578 = vrot.lane.b32.xlu0 %v1561, 97
        %v1579 = vpop.permute.xlu0 %1578
        %1580 = vrot.lane.b32.xlu0 %v1562, 97
        %v1581 = vpop.permute.xlu0 %1580
        %1582 = vrot.lane.b32.xlu0 %v1573, 97
        %v1583 = vpop.permute.xlu0 %1582
        %1584 = vrot.lane.b32.xlu0 %v1563, 97
        %v1585 = vpop.permute.xlu0 %1584
        %vm1586 = vcmask 793600
        %v1587 = vsel %vm1586, %v1575, %v1577
        %v1588 = vsel %vm1586, %v1577, %v1579
        %v1589 = vsel %vm1586, %v1581, %v1583
        %v1590 = vsel %vm1586, %v1583, %v1585
        %v1595 = vmul.f32 %v1566, %v1587
        %v1596 = vmul.f32 %v1566, %v1588
        %v1597 = vmul.f32 %v1566, %v1589
        %v1598 = vmul.f32 %v1566, %v1590
        %v1599 = vadd.f32 %v1513, %v1595
        %v1600 = vadd.f32 %v1514, %v1596
        %v1601 = vadd.f32 %v1515, %v1597
        %v1602 = vadd.f32 %v1516, %v1598
        %v1603 = vadd.f32 %v1556, %v1599
        %v1604 = vadd.f32 %v1557, %v1600
        %v1605 = vadd.f32 %v1558, %v1601
        %v1606 = vadd.f32 %v1559, %v1602
        %v1607 = vsel %vm247, 1, 0
        %v1608 = vsel %vm248, 1, 0
        %vm1609 = vcmp.eq.s32.totalorder %v1607, 1
        %vm1610 = vcmp.eq.s32.totalorder %v1608, 1
        %v1611 = vsel %vm1609, %v1603, 0.0
        %v1612 = vsel %vm1610, %v1604, 0.0
        %v1613 = vsel %vm1609, %v1605, 0.0
        %v1614 = vsel %vm1610, %v1606, 0.0
        %vm1615 = vcmask 1043456
        %v1616 = vsel %vm1615, %v1611, 0.0
        %v1617 = vsel %vm1615, %v1612, 0.0
        %v1618 = vadd.f32 %v1616, %v1617
        %v1619 = vsel %vm1615, %v1613, 0.0
        %v1620 = vadd.f32 %v1618, %v1619
        %v1621 = vsel %vm1615, %v1614, 0.0
        %v1622 = vadd.f32 %v1620, %v1621
        %1623 = vadd.xlane.f32.xlu0 %v1622
        %v1624 = vpop.xlane.xlu0 %1623
        %v1625 = vmul.f32 %v1624, 0.015151516
        %v1626 = vsub.f32 %v1603, %v1625
        %v1627 = vsub.f32 %v1604, %v1625
        %v1628 = vsub.f32 %v1605, %v1625
        %v1629 = vsub.f32 %v1606, %v1625
        %v1630 = vsel %vm1609, %v1626, 0.0
        %v1631 = vsel %vm1610, %v1627, 0.0
        %v1632 = vsel %vm1609, %v1628, 0.0
        %v1633 = vsel %vm1610, %v1629, 0.0
        %v1634 = vmul.f32 %v1630, %v1630
        %v1635 = vmul.f32 %v1631, %v1631
        %v1636 = vmul.f32 %v1632, %v1632
        %v1637 = vmul.f32 %v1633, %v1633
        %v1638 = vsel %vm1615, %v1634, 0.0
        %v1639 = vsel %vm1615, %v1635, 0.0
        %v1640 = vadd.f32 %v1638, %v1639
        %v1641 = vsel %vm1615, %v1636, 0.0
        %v1642 = vadd.f32 %v1640, %v1641
        %v1643 = vsel %vm1615, %v1637, 0.0
        %v1644 = vadd.f32 %v1642, %v1643
        %1645 = vadd.xlane.f32.xlu0 %v1644
        %v1646 = vpop.xlane.xlu0 %1645
        %v1647 = vmul.f32 %v1646, 0.015151516
        %v1648 = vadd.f32 %v1647, 1e-05
        %v1649 = vrsqrt.pop %v1648
        %v1650 = vmul.f32 %v1649, 0.03125
        %v1651 = vand.u32 2147483647, %v1626
        %v1652 = vand.u32 2147483647, %v1627
        %v1653 = vand.u32 2147483647, %v1628
        %v1654 = vand.u32 2147483647, %v1629
        %v1655 = vmul.f32 %v1651, %v1650
        %v1656 = vmul.f32 %v1652, %v1650
        %v1657 = vmul.f32 %v1653, %v1650
        %v1658 = vmul.f32 %v1654, %v1650
        %1663 = vrot.lane.b32.xlu0 %v1655, 127
        %v1664 = vpop.permute.xlu0 %1663
        %1665 = vrot.lane.b32.xlu0 %v1656, 127
        %v1666 = vpop.permute.xlu0 %1665
        %1667 = vrot.lane.b32.xlu0 %v1657, 127
        %v1668 = vpop.permute.xlu0 %1667
        %1669 = vrot.lane.b32.xlu0 %v1658, 127
        %v1670 = vpop.permute.xlu0 %1669
        %v1671 = vsel %vm296, %v1664, %v1666
        %v1672 = vsel %vm296, %v1668, %v1670
        %v1675 = vadd.f32 %v1655, %v1671
        %v1676 = vadd.f32 %v1657, %v1672
        %1677 = vrot.lane.b32.xlu0 %v1655, 126
        %v1678 = vpop.permute.xlu0 %1677
        %1679 = vrot.lane.b32.xlu0 %v1656, 126
        %v1680 = vpop.permute.xlu0 %1679
        %1681 = vrot.lane.b32.xlu0 %v1657, 126
        %v1682 = vpop.permute.xlu0 %1681
        %1683 = vrot.lane.b32.xlu0 %v1658, 126
        %v1684 = vpop.permute.xlu0 %1683
        %v1685 = vsel %vm339, %v1678, %v1680
        %v1686 = vsel %vm339, %v1682, %v1684
        %v1689 = vadd.f32 %v1675, %v1685
        %v1690 = vadd.f32 %v1676, %v1686
        %1691 = vrot.lane.b32.xlu0 %v1655, 125
        %v1692 = vpop.permute.xlu0 %1691
        %1693 = vrot.lane.b32.xlu0 %v1656, 125
        %v1694 = vpop.permute.xlu0 %1693
        %1695 = vrot.lane.b32.xlu0 %v1657, 125
        %v1696 = vpop.permute.xlu0 %1695
        %1697 = vrot.lane.b32.xlu0 %v1658, 125
        %v1698 = vpop.permute.xlu0 %1697
        %v1699 = vsel %vm382, %v1692, %v1694
        %v1700 = vsel %vm382, %v1696, %v1698
        %v1703 = vadd.f32 %v1689, %v1699
        %v1704 = vadd.f32 %v1690, %v1700
        %1705 = vrot.lane.b32.xlu0 %v1655, 124
        %v1706 = vpop.permute.xlu0 %1705
        %1707 = vrot.lane.b32.xlu0 %v1656, 124
        %v1708 = vpop.permute.xlu0 %1707
        %1709 = vrot.lane.b32.xlu0 %v1657, 124
        %v1710 = vpop.permute.xlu0 %1709
        %1711 = vrot.lane.b32.xlu0 %v1658, 124
        %v1712 = vpop.permute.xlu0 %1711
        %v1713 = vsel %vm425, %v1706, %v1708
        %v1714 = vsel %vm425, %v1710, %v1712
        %v1717 = vadd.f32 %v1703, %v1713
        %v1718 = vadd.f32 %v1704, %v1714
        %1719 = vrot.lane.b32.xlu0 %v1655, 123
        %v1720 = vpop.permute.xlu0 %1719
        %1721 = vrot.lane.b32.xlu0 %v1656, 123
        %v1722 = vpop.permute.xlu0 %1721
        %1723 = vrot.lane.b32.xlu0 %v1657, 123
        %v1724 = vpop.permute.xlu0 %1723
        %1725 = vrot.lane.b32.xlu0 %v1658, 123
        %v1726 = vpop.permute.xlu0 %1725
        %v1727 = vsel %vm468, %v1720, %v1722
        %v1728 = vsel %vm468, %v1724, %v1726
        %v1731 = vadd.f32 %v1717, %v1727
        %v1732 = vadd.f32 %v1718, %v1728
        %1733 = vrot.lane.b32.xlu0 %v1655, 122
        %v1734 = vpop.permute.xlu0 %1733
        %1735 = vrot.lane.b32.xlu0 %v1656, 122
        %v1736 = vpop.permute.xlu0 %1735
        %1737 = vrot.lane.b32.xlu0 %v1657, 122
        %v1738 = vpop.permute.xlu0 %1737
        %1739 = vrot.lane.b32.xlu0 %v1658, 122
        %v1740 = vpop.permute.xlu0 %1739
        %v1741 = vsel %vm511, %v1734, %v1736
        %v1742 = vsel %vm511, %v1738, %v1740
        %v1745 = vadd.f32 %v1731, %v1741
        %v1746 = vadd.f32 %v1732, %v1742
        %1747 = vrot.lane.b32.xlu0 %v1655, 121
        %v1748 = vpop.permute.xlu0 %1747
        %1749 = vrot.lane.b32.xlu0 %v1656, 121
        %v1750 = vpop.permute.xlu0 %1749
        %1751 = vrot.lane.b32.xlu0 %v1657, 121
        %v1752 = vpop.permute.xlu0 %1751
        %1753 = vrot.lane.b32.xlu0 %v1658, 121
        %v1754 = vpop.permute.xlu0 %1753
        %v1755 = vsel %vm554, %v1748, %v1750
        %v1756 = vsel %vm554, %v1752, %v1754
        %v1759 = vadd.f32 %v1745, %v1755
        %v1760 = vadd.f32 %v1746, %v1756
        %1761 = vrot.lane.b32.xlu0 %v1655, 120
        %v1762 = vpop.permute.xlu0 %1761
        %1763 = vrot.lane.b32.xlu0 %v1656, 120
        %v1764 = vpop.permute.xlu0 %1763
        %1765 = vrot.lane.b32.xlu0 %v1657, 120
        %v1766 = vpop.permute.xlu0 %1765
        %1767 = vrot.lane.b32.xlu0 %v1658, 120
        %v1768 = vpop.permute.xlu0 %1767
        %v1769 = vsel %vm597, %v1762, %v1764
        %v1770 = vsel %vm597, %v1766, %v1768
        %v1773 = vadd.f32 %v1759, %v1769
        %v1774 = vadd.f32 %v1760, %v1770
        %1775 = vrot.lane.b32.xlu0 %v1655, 119
        %v1776 = vpop.permute.xlu0 %1775
        %1777 = vrot.lane.b32.xlu0 %v1656, 119
        %v1778 = vpop.permute.xlu0 %1777
        %1779 = vrot.lane.b32.xlu0 %v1657, 119
        %v1780 = vpop.permute.xlu0 %1779
        %1781 = vrot.lane.b32.xlu0 %v1658, 119
        %v1782 = vpop.permute.xlu0 %1781
        %v1783 = vsel %vm640, %v1776, %v1778
        %v1784 = vsel %vm640, %v1780, %v1782
        %v1787 = vadd.f32 %v1773, %v1783
        %v1788 = vadd.f32 %v1774, %v1784
        %1789 = vrot.lane.b32.xlu0 %v1655, 118
        %v1790 = vpop.permute.xlu0 %1789
        %1791 = vrot.lane.b32.xlu0 %v1656, 118
        %v1792 = vpop.permute.xlu0 %1791
        %1793 = vrot.lane.b32.xlu0 %v1657, 118
        %v1794 = vpop.permute.xlu0 %1793
        %1795 = vrot.lane.b32.xlu0 %v1658, 118
        %v1796 = vpop.permute.xlu0 %1795
        %v1797 = vsel %vm683, %v1790, %v1792
        %v1798 = vsel %vm683, %v1794, %v1796
        %v1801 = vadd.f32 %v1787, %v1797
        %v1802 = vadd.f32 %v1788, %v1798
        %1803 = vrot.lane.b32.xlu0 %v1655, 117
        %v1804 = vpop.permute.xlu0 %1803
        %1805 = vrot.lane.b32.xlu0 %v1656, 117
        %v1806 = vpop.permute.xlu0 %1805
        %1807 = vrot.lane.b32.xlu0 %v1657, 117
        %v1808 = vpop.permute.xlu0 %1807
        %1809 = vrot.lane.b32.xlu0 %v1658, 117
        %v1810 = vpop.permute.xlu0 %1809
        %v1811 = vsel %vm726, %v1804, %v1806
        %v1812 = vsel %vm726, %v1808, %v1810
        %v1815 = vadd.f32 %v1801, %v1811
        %v1816 = vadd.f32 %v1802, %v1812
        %1817 = vrot.lane.b32.xlu0 %v1655, 116
        %v1818 = vpop.permute.xlu0 %1817
        %1819 = vrot.lane.b32.xlu0 %v1656, 116
        %v1820 = vpop.permute.xlu0 %1819
        %1821 = vrot.lane.b32.xlu0 %v1657, 116
        %v1822 = vpop.permute.xlu0 %1821
        %1823 = vrot.lane.b32.xlu0 %v1658, 116
        %v1824 = vpop.permute.xlu0 %1823
        %v1825 = vsel %vm769, %v1818, %v1820
        %v1826 = vsel %vm769, %v1822, %v1824
        %v1829 = vadd.f32 %v1815, %v1825
        %v1830 = vadd.f32 %v1816, %v1826
        %1831 = vrot.lane.b32.xlu0 %v1655, 115
        %v1832 = vpop.permute.xlu0 %1831
        %1833 = vrot.lane.b32.xlu0 %v1656, 115
        %v1834 = vpop.permute.xlu0 %1833
        %1835 = vrot.lane.b32.xlu0 %v1657, 115
        %v1836 = vpop.permute.xlu0 %1835
        %1837 = vrot.lane.b32.xlu0 %v1658, 115
        %v1838 = vpop.permute.xlu0 %1837
        %v1839 = vsel %vm812, %v1832, %v1834
        %v1840 = vsel %vm812, %v1836, %v1838
        %v1843 = vadd.f32 %v1829, %v1839
        %v1844 = vadd.f32 %v1830, %v1840
        %1845 = vrot.lane.b32.xlu0 %v1655, 114
        %v1846 = vpop.permute.xlu0 %1845
        %1847 = vrot.lane.b32.xlu0 %v1656, 114
        %v1848 = vpop.permute.xlu0 %1847
        %1849 = vrot.lane.b32.xlu0 %v1657, 114
        %v1850 = vpop.permute.xlu0 %1849
        %1851 = vrot.lane.b32.xlu0 %v1658, 114
        %v1852 = vpop.permute.xlu0 %1851
        %v1853 = vsel %vm855, %v1846, %v1848
        %v1854 = vsel %vm855, %v1850, %v1852
        %v1857 = vadd.f32 %v1843, %v1853
        %v1858 = vadd.f32 %v1844, %v1854
        %1859 = vrot.lane.b32.xlu0 %v1655, 113
        %v1860 = vpop.permute.xlu0 %1859
        %1861 = vrot.lane.b32.xlu0 %v1656, 113
        %v1862 = vpop.permute.xlu0 %1861
        %1863 = vrot.lane.b32.xlu0 %v1657, 113
        %v1864 = vpop.permute.xlu0 %1863
        %1865 = vrot.lane.b32.xlu0 %v1658, 113
        %v1866 = vpop.permute.xlu0 %1865
        %v1867 = vsel %vm898, %v1860, %v1862
        %v1868 = vsel %vm898, %v1864, %v1866
        %v1871 = vadd.f32 %v1857, %v1867
        %v1872 = vadd.f32 %v1858, %v1868
        %1874 = vset.pattern.permute.xlu0 0
        %1875 = vperm.xlu0 %1874, %v243
        %v1876 = vpop.permute.xlu0 %1875
        %v1878 = vadd.f32 %v1871, %v1876
        %v1879 = vadd.f32 %v1872, %v1876
        %1880 = vst [vmem:[%s227] sm:$0xf] %v1878
        %1881 = vst [vmem:[%s227 + $0x4] sm:$0xf] %v1879
        %s1882 = sand.u32 %s122, 1
        %s1883 = scalar_lea.sflag [#allocation4], %s1882
        %s1884 = sand.u32 %s122, 1
        %s1885 = smul.addr %s1884, 8
        %s1886 = scalar_lea.vmem [#allocation5], %s1885
        // Predicated region
        $region37: #{tpu_custom_call.1} parent=31 // pred_check
          %p1887 = pneg %p132
        $region38: #{tpu_custom_call.1} parent=31 // pred_check_branch
          %1889 = sbr.rel (%p1887) target = $region40
        $region39: #{tpu_custom_call.1} parent=31 // pred_region
          %s1891 = ssub.s32 128, 128
          %1892 = vsyncadd %s1883, %s1891
          %s1893 = smul.addr %s22, 2
          %s1894 = sadd.s32 %s23, %s1893
          %s1895 = smul.addr %s1894, 64
          %s1896 = scalar_lea.hbm %s3, %s1895
          %s1897 = sshll.u32 %s1886, 4
          %s1898 = int_to_ptr.vmem [resolvable:$true] %s1897
          %1903 = dma.vmem_to_hbm [thread:$0]  %s1898, 128, %s1896, %s1883, 64, 64, 4
        $region40: #{tpu_custom_call.1} parent=31 // pred_fallthru
          _
      $region32: #{tpu_custom_call.1} parent=5 // pred_fallthru
        _
      %p1904 = scmp.le.s32.totalorder 2, %s13
      // Predicated region
      $region41: #{tpu_custom_call.1} parent=5 // pred_check
        %p1905 = pneg %p1904
      $region42: #{tpu_custom_call.1} parent=5 // pred_check_branch
        %1907 = sbr.rel (%p1905) target = $region44
      $region43: #{tpu_custom_call.1} parent=5 // pred_region
        %s1908 = ssub.s32 %s13, 2
        // Predicated region
        $region45: #{tpu_custom_call.1} parent=43 // pred_check
          %p1909 = pneg %p138
        $region46: #{tpu_custom_call.1} parent=43 // pred_check_branch
          %1911 = sbr.rel (%p1909) target = $region48
        $region47: #{tpu_custom_call.1} parent=43 // pred_region
          %s1912 = sand.u32 %s123, 1
          %s1913 = scalar_lea.sflag [#allocation4], %s1912
          %s1914 = sand.u32 %s123, 1
          %s1915 = smul.addr %s1914, 8
          %s1916 = scalar_lea.vmem [#allocation5], %s1915
          %1917 = dma.done %s1913, 128
        $region48: #{tpu_custom_call.1} parent=43 // pred_fallthru
          _
      $region44: #{tpu_custom_call.1} parent=5 // pred_fallthru
        _
    $region6: #{tpu_custom_call.1} parent=1 // loop_footer
      %s17 = sadd.s32 1, %s13
    $region7: #{tpu_custom_call.1} parent=1 // loop_footer_branch
      %12 = sbr.rel target = $region3
    $region8: #{tpu_custom_call.1} parent=1 // loop_exit
      _
    %1918 = vsyncpa [#allocation3], 1
    %s1919 = scalar_lea.sflag [#allocation3], 1
    %1920 = vsyncpa %s1919, 1
    %1921 = vsyncpa [#allocation4], 1
    %s1922 = scalar_lea.sflag [#allocation4], 1
    %1923 = vsyncpa %s1922, 1

</llo_original>
